<compile_context>
chip_gen: v5e
topology: v5e:2x2
jax: 0.10.0
libtpu: 0.0.40
codegen_flags: <defaults>
</compile_context>

<pallas_src>
import jax
import jax.numpy as jnp
from jax.experimental import pallas as pl
from jax.experimental.pallas import tpu as pltpu

ORIGINAL_DIM = 784
INTERMEDIATE_DIM = 392
LATENT_DIM = 16
PADDED_OUT_DIM = 896   # 784 rounded up to 7 * 128 for lane-dense recon stores
ML_PAD = 128           # fused [mean | logvar] (32) padded to 128 lanes
EPS_PAD = 128          # eps (16) padded to 128 lanes for a lane-dense input DMA


def _round_up(x, m):
    return ((x + m - 1) // m) * m


def vae_kernel(
    x_ref,        # (TM, 784)  f32 activation tile
    eps_ref,      # (TM, 128)  f32 noise tile (only first 16 lanes meaningful)
    w_enc_ref,    # (784, 392) bf16
    b_enc_ref,    # (1, 392)   f32
    w_ml_ref,     # (392, 128) bf16   fused [w_mean | w_logvar | zeros]
    b_ml_ref,     # (1, 128)   f32    fused [b_mean | b_logvar | zeros]
    w_dec1_ref,   # (16, 392)  bf16
    b_dec1_ref,   # (1, 392)   f32
    w_dec2_ref,   # (392, 896) bf16   output dim zero-padded 784 -> 896
    b_dec2_ref,   # (1, 896)   f32    zero-padded 784 -> 896
    recon_ref,    # out: (TM, 896) bf16
    ml_ref,       # out: (TM, 128) f32   fused [mean | logvar | zeros]
):
    x = x_ref[...].astype(jnp.bfloat16)

    # encoder: Linear(784 -> 392) + ReLU   (bf16 operands, f32 accumulation)
    h = jnp.dot(x, w_enc_ref[...], preferred_element_type=jnp.float32) + b_enc_ref[...]
    h = jnp.maximum(h, 0.0)

    # fused fc_mean / fc_logvar: single Linear(392 -> 128pad), lane-dense store
    ml = jnp.dot(h.astype(jnp.bfloat16), w_ml_ref[...],
                 preferred_element_type=jnp.float32) + b_ml_ref[...]
    ml_ref[...] = ml

    # reparameterize: z = mean + eps * exp(0.5 * logvar)
    mean = ml[:, :LATENT_DIM]
    logvar = ml[:, LATENT_DIM:2 * LATENT_DIM]
    eps = eps_ref[...][:, :LATENT_DIM]
    z = mean + eps * jnp.exp(0.5 * logvar)

    # decoder: Linear(16 -> 392) + ReLU, Linear(392 -> 896pad) + Sigmoid
    h2 = jnp.dot(z.astype(jnp.bfloat16), w_dec1_ref[...],
                 preferred_element_type=jnp.float32) + b_dec1_ref[...]
    h2 = jnp.maximum(h2, 0.0)
    logits = jnp.dot(h2.astype(jnp.bfloat16), w_dec2_ref[...],
                     preferred_element_type=jnp.float32) + b_dec2_ref[...]
    # sigmoid(x) = 0.5 * tanh(0.5 * x) + 0.5  -> single EUP push per vreg, exact
    recon_ref[...] = (0.5 * jnp.tanh(0.5 * logits) + 0.5).astype(jnp.bfloat16)


def _choose_tm(B, block_m):
    """Pick the batch tile.  Large batches use block_m; small batches are split so the
    grid has >=2 steps when possible (v7x megacore: both TCs get work)."""
    if B >= 2 * block_m:
        return block_m
    return max(_round_up(-(-B // 2), 8), 8)


def vae_forward(x_img, params, eps, *, block_m=512):
    """x_img: (B, 1, 28, 28) f32 NCHW.  eps: (B, 16) f32 ~ N(0,1).
    Returns (recon bf16 (B,784), mean f32 (B,16), logvar f32 (B,16))."""
    B = x_img.shape[0]
    x_flat = x_img.reshape(B, -1).astype(jnp.float32)   # x.view(x.size(0), -1)

    tm = _choose_tm(B, block_m)
    b_pad = _round_up(B, tm)
    x_flat = jnp.pad(x_flat, ((0, b_pad - B), (0, 0)))
    # eps: pad batch rows and lanes (16 -> 128) so the input DMA is lane-dense.
    # TODO(synk): optionally draw eps in-kernel (pltpu.prng_seed + prng_random_bits,
    # Box-Muller) to drop this HBM stream entirely; that changes RNG semantics vs
    # torch.randn_like, so it is not done here.
    eps_p = jnp.pad(eps.astype(jnp.float32),
                    ((0, b_pad - B), (0, EPS_PAD - LATENT_DIM)))

    # Weight prep: bf16 weights, fused+padded mean/logvar, lane-padded decoder output.
    w_enc = params["w_enc"].astype(jnp.bfloat16)
    b_enc = params["b_enc"].astype(jnp.float32)
    w_ml = jnp.concatenate([params["w_mean"], params["w_logvar"]], axis=1)
    w_ml = jnp.pad(w_ml, ((0, 0), (0, ML_PAD - 2 * LATENT_DIM))).astype(jnp.bfloat16)
    b_ml = jnp.concatenate([params["b_mean"], params["b_logvar"]], axis=1)
    b_ml = jnp.pad(b_ml, ((0, 0), (0, ML_PAD - 2 * LATENT_DIM))).astype(jnp.float32)
    w_dec1 = params["w_dec1"].astype(jnp.bfloat16)
    b_dec1 = params["b_dec1"].astype(jnp.float32)
    pad_n = PADDED_OUT_DIM - ORIGINAL_DIM
    w_dec2 = jnp.pad(params["w_dec2"], ((0, 0), (0, pad_n))).astype(jnp.bfloat16)
    b_dec2 = jnp.pad(params["b_dec2"], ((0, 0), (0, pad_n))).astype(jnp.float32)

    grid = (b_pad // tm,)
    row_map = lambda i: (i, 0)     # batch-tiled arrays
    const_map = lambda i: (0, 0)   # weights/biases: DMA once, stay VMEM-resident

    in_specs = [
        pl.BlockSpec((tm, ORIGINAL_DIM), row_map),                      # x
        pl.BlockSpec((tm, EPS_PAD), row_map),                           # eps (padded)
        pl.BlockSpec((ORIGINAL_DIM, INTERMEDIATE_DIM), const_map),      # w_enc
        pl.BlockSpec((1, INTERMEDIATE_DIM), const_map),                 # b_enc
        pl.BlockSpec((INTERMEDIATE_DIM, ML_PAD), const_map),            # w_ml
        pl.BlockSpec((1, ML_PAD), const_map),                           # b_ml
        pl.BlockSpec((LATENT_DIM, INTERMEDIATE_DIM), const_map),        # w_dec1
        pl.BlockSpec((1, INTERMEDIATE_DIM), const_map),                 # b_dec1
        pl.BlockSpec((INTERMEDIATE_DIM, PADDED_OUT_DIM), const_map),    # w_dec2
        pl.BlockSpec((1, PADDED_OUT_DIM), const_map),                   # b_dec2
    ]
    out_specs = (
        pl.BlockSpec((tm, PADDED_OUT_DIM), row_map),                    # recon (bf16, padded)
        pl.BlockSpec((tm, ML_PAD), row_map),                            # [mean | logvar] (padded)
    )

    flops = int(2 * b_pad * (ORIGINAL_DIM * INTERMEDIATE_DIM
                             + INTERMEDIATE_DIM * ML_PAD
                             + LATENT_DIM * INTERMEDIATE_DIM
                             + INTERMEDIATE_DIM * PADDED_OUT_DIM))
    transcendentals = int(b_pad * (LATENT_DIM + PADDED_OUT_DIM))
    bytes_accessed = int(
        x_flat.size * 4 + eps_p.size * 4
        + (w_enc.size + w_ml.size + w_dec1.size + w_dec2.size) * 2
        + (b_enc.size + b_ml.size + b_dec1.size + b_dec2.size) * 4
        + b_pad * PADDED_OUT_DIM * 2          # recon out, bf16
        + b_pad * ML_PAD * 4)                 # ml out, f32

    recon_pad, ml = pl.pallas_call(
        vae_kernel,
        out_shape=(
            jax.ShapeDtypeStruct((b_pad, PADDED_OUT_DIM), jnp.bfloat16),
            jax.ShapeDtypeStruct((b_pad, ML_PAD), jnp.float32),
        ),
        grid_spec=pltpu.PrefetchScalarGridSpec(
            num_scalar_prefetch=0,
            grid=grid,
            in_specs=in_specs,
            out_specs=out_specs,
        ),
        compiler_params=pltpu.CompilerParams(
            dimension_semantics=("parallel",),
        ),
        cost_estimate=pl.CostEstimate(
            flops=flops,
            transcendentals=transcendentals,
            bytes_accessed=bytes_accessed,
        ),
    )(x_flat, eps_p, w_enc, b_enc, w_ml, b_ml, w_dec1, b_dec1, w_dec2, b_dec2)

    # NOTE: padded columns/rows of recon_pad and ml contain junk; always slice here.
    recon = recon_pad[:B, :ORIGINAL_DIM]                 # bf16 (documented precision change)
    mean = ml[:B, :LATENT_DIM]
    logvar = ml[:B, LATENT_DIM:2 * LATENT_DIM]
    return recon, mean, logvar


def init_params(key):
    """Deterministic synthetic parameters (Linear weights stored as (in, out), f32)."""
    keys = jax.random.split(key, 10)

    def linear(kw, kb, fan_in, fan_out):
        bound = 1.0 / jnp.sqrt(fan_in)   # PyTorch default init scale
        w = jax.random.uniform(kw, (fan_in, fan_out), jnp.float32, -bound, bound)
        b = jax.random.uniform(kb, (1, fan_out), jnp.float32, -bound, bound)
        return w, b

    w_enc, b_enc = linear(keys[0], keys[1], ORIGINAL_DIM, INTERMEDIATE_DIM)
    w_mean, b_mean = linear(keys[2], keys[3], INTERMEDIATE_DIM, LATENT_DIM)
    w_logvar, b_logvar = linear(keys[4], keys[5], INTERMEDIATE_DIM, LATENT_DIM)
    w_dec1, b_dec1 = linear(keys[6], keys[7], LATENT_DIM, INTERMEDIATE_DIM)
    w_dec2, b_dec2 = linear(keys[8], keys[9], INTERMEDIATE_DIM, ORIGINAL_DIM)

    return dict(
        w_enc=w_enc, b_enc=b_enc,
        w_mean=w_mean, b_mean=b_mean,
        w_logvar=w_logvar, b_logvar=b_logvar,
        w_dec1=w_dec1, b_dec1=b_dec1,
        w_dec2=w_dec2, b_dec2=b_dec2,
    )


def vae_reference(x_img, params, eps):
    """Pure-JAX reference mirroring the kernel's bf16-weight / f32-accum math
    (f32 outputs; the kernel additionally rounds recon to bf16)."""
    B = x_img.shape[0]
    x = x_img.reshape(B, -1).astype(jnp.float32)
    bf = jnp.bfloat16

    h = jnp.dot(x.astype(bf), params["w_enc"].astype(bf),
                preferred_element_type=jnp.float32) + params["b_enc"]
    h = jnp.maximum(h, 0.0)
    hb = h.astype(bf)
    mean = jnp.dot(hb, params["w_mean"].astype(bf),
                   preferred_element_type=jnp.float32) + params["b_mean"]
    logvar = jnp.dot(hb, params["w_logvar"].astype(bf),
                     preferred_element_type=jnp.float32) + params["b_logvar"]
    z = mean + eps * jnp.exp(0.5 * logvar)
    h2 = jnp.dot(z.astype(bf), params["w_dec1"].astype(bf),
                 preferred_element_type=jnp.float32) + params["b_dec1"]
    h2 = jnp.maximum(h2, 0.0)
    logits = jnp.dot(h2.astype(bf), params["w_dec2"].astype(bf),
                     preferred_element_type=jnp.float32) + params["b_dec2"]
    recon = jax.nn.sigmoid(logits)
    return recon, mean, logvar


if __name__ == "__main__":
    key = jax.random.PRNGKey(0)
    k_x, k_eps, k_params = jax.random.split(key, 3)

    B = 4
    x_img = jax.random.normal(k_x, (B, 1, 28, 28), jnp.float32)  # NCHW, 1*28*28 = 784
    params = init_params(k_params)
    # eps ~ N(0,1): the randn_like in reparameterize, drawn outside the kernel
    eps = jax.random.normal(k_eps, (B, LATENT_DIM), jnp.float32)

    recon, mean, logvar = jax.jit(vae_forward)(x_img, params, eps)
    jax.block_until_ready((recon, mean, logvar))

    # sanity check against a pure-JAX reference of the same (bf16-weight) math
    r_ref, m_ref, lv_ref = vae_reference(x_img, params, eps)
    assert recon.shape == (B, ORIGINAL_DIM) and recon.dtype == jnp.bfloat16
    assert mean.shape == (B, LATENT_DIM) and logvar.shape == (B, LATENT_DIM)
    # recon is bf16 (8-bit mantissa): absolute rounding error up to ~4e-3 near 1.0
    assert jnp.allclose(recon.astype(jnp.float32), r_ref, atol=1e-2, rtol=1e-2)
    assert jnp.allclose(mean, m_ref, atol=2e-3, rtol=2e-3)
    assert jnp.allclose(logvar, lv_ref, atol=2e-3, rtol=2e-3)

    print("KERNEL_OK")
</pallas_src>

<mosaic_0001>
module attributes {stable_mosaic.version = 11 : i64} {
  func.func @vae_kernel(%arg0: i32, %arg1: memref<8x784xf32, #tpu.memory_space<vmem>>, %arg2: memref<8x128xf32, #tpu.memory_space<vmem>>, %arg3: memref<784x392xbf16, #tpu.memory_space<vmem>>, %arg4: memref<1x392xf32, #tpu.memory_space<vmem>>, %arg5: memref<392x128xbf16, #tpu.memory_space<vmem>>, %arg6: memref<1x128xf32, #tpu.memory_space<vmem>>, %arg7: memref<16x392xbf16, #tpu.memory_space<vmem>>, %arg8: memref<1x392xf32, #tpu.memory_space<vmem>>, %arg9: memref<392x896xbf16, #tpu.memory_space<vmem>>, %arg10: memref<1x896xf32, #tpu.memory_space<vmem>>, %arg11: memref<8x896xbf16, #tpu.memory_space<vmem>>, %arg12: memref<8x128xf32, #tpu.memory_space<vmem>>) attributes {dimension_semantics = [#tpu.dimension_semantics<parallel>], iteration_bounds = array<i64: 1>, scalar_prefetch = 0 : i64, scratch_operands = 0 : i64, tpu.core_type = #tpu.core_type<tc>, window_params = [{transform_indices = @transform_0, window_bounds = array<i64: 8, 784>}, {transform_indices = @transform_1, window_bounds = array<i64: 8, 128>}, {pipeline_mode = #tpu.pipeline_mode<synchronous>, transform_indices = @transform_2, window_bounds = array<i64: 784, 392>}, {pipeline_mode = #tpu.pipeline_mode<synchronous>, transform_indices = @transform_3, window_bounds = array<i64: 1, 392>}, {pipeline_mode = #tpu.pipeline_mode<synchronous>, transform_indices = @transform_4, window_bounds = array<i64: 392, 128>}, {pipeline_mode = #tpu.pipeline_mode<synchronous>, transform_indices = @transform_5, window_bounds = array<i64: 1, 128>}, {pipeline_mode = #tpu.pipeline_mode<synchronous>, transform_indices = @transform_6, window_bounds = array<i64: 16, 392>}, {pipeline_mode = #tpu.pipeline_mode<synchronous>, transform_indices = @transform_7, window_bounds = array<i64: 1, 392>}, {pipeline_mode = #tpu.pipeline_mode<synchronous>, transform_indices = @transform_8, window_bounds = array<i64: 392, 896>}, {pipeline_mode = #tpu.pipeline_mode<synchronous>, transform_indices = @transform_9, window_bounds = array<i64: 1, 896>}, {transform_indices = @transform_10, window_bounds = array<i64: 8, 896>}, {transform_indices = @transform_11, window_bounds = array<i64: 8, 128>}]} {
    %c0 = arith.constant 0 : index
    %c0_0 = arith.constant 0 : index
    %0 = vector.load %arg1[%c0, %c0_0] : memref<8x784xf32, #tpu.memory_space<vmem>>, vector<8x784xf32>
    %1 = arith.truncf %0 : vector<8x784xf32> to vector<8x784xbf16>
    %c0_1 = arith.constant 0 : index
    %c0_2 = arith.constant 0 : index
    %2 = vector.load %arg3[%c0_1, %c0_2] : memref<784x392xbf16, #tpu.memory_space<vmem>>, vector<784x392xbf16>
    %cst = arith.constant dense<0.000000e+00> : vector<8x392xf32>
    %3 = tpu.matmul %1, %2, %cst {dimension_numbers = #tpu.dot_dimension_numbers<[1], [0], [0], [1], [0, 0, 1, 1], [], []>} : vector<8x784xbf16>, vector<784x392xbf16>, vector<8x392xf32> -> vector<8x392xf32>
    %c0_3 = arith.constant 0 : index
    %c0_4 = arith.constant 0 : index
    %4 = vector.load %arg4[%c0_3, %c0_4] : memref<1x392xf32, #tpu.memory_space<vmem>>, vector<1x392xf32>
    %5 = vector.broadcast %4 : vector<1x392xf32> to vector<8x392xf32>
    %6 = arith.addf %3, %5 : vector<8x392xf32>
    %cst_5 = arith.constant 0.000000e+00 : f32
    %7 = vector.broadcast %cst_5 : f32 to vector<8x392xf32>
    %8 = arith.maximumf %6, %7 : vector<8x392xf32>
    %9 = arith.truncf %8 : vector<8x392xf32> to vector<8x392xbf16>
    %c0_6 = arith.constant 0 : index
    %c0_7 = arith.constant 0 : index
    %10 = vector.load %arg5[%c0_6, %c0_7] : memref<392x128xbf16, #tpu.memory_space<vmem>>, vector<392x128xbf16>
    %cst_8 = arith.constant dense<0.000000e+00> : vector<8x128xf32>
    %11 = tpu.matmul %9, %10, %cst_8 {dimension_numbers = #tpu.dot_dimension_numbers<[1], [0], [0], [1], [0, 0, 1, 1], [], []>} : vector<8x392xbf16>, vector<392x128xbf16>, vector<8x128xf32> -> vector<8x128xf32>
    %c0_9 = arith.constant 0 : index
    %c0_10 = arith.constant 0 : index
    %12 = vector.load %arg6[%c0_9, %c0_10] : memref<1x128xf32, #tpu.memory_space<vmem>>, vector<1x128xf32>
    %13 = vector.broadcast %12 : vector<1x128xf32> to vector<8x128xf32>
    %14 = arith.addf %11, %13 : vector<8x128xf32>
    %c0_11 = arith.constant 0 : index
    %c0_12 = arith.constant 0 : index
    %15 = vector.load %arg12[%c0_11, %c0_12] : memref<8x128xf32, #tpu.memory_space<vmem>>, vector<8x128xf32>
    tpu.vector_store %arg12[%c0_11, %c0_12], %14 {strides = array<i32>} : memref<8x128xf32, #tpu.memory_space<vmem>>, vector<8x128xf32>,
    %16 = vector.extract_strided_slice %14 {offsets = [0, 0], sizes = [8, 16], strides = [1, 1]} : vector<8x128xf32> to vector<8x16xf32>
    %17 = vector.extract_strided_slice %14 {offsets = [0, 16], sizes = [8, 16], strides = [1, 1]} : vector<8x128xf32> to vector<8x16xf32>
    %c0_13 = arith.constant 0 : index
    %c0_14 = arith.constant 0 : index
    %18 = vector.load %arg2[%c0_13, %c0_14] : memref<8x128xf32, #tpu.memory_space<vmem>>, vector<8x128xf32>
    %19 = vector.extract_strided_slice %18 {offsets = [0, 0], sizes = [8, 16], strides = [1, 1]} : vector<8x128xf32> to vector<8x16xf32>
    %cst_15 = arith.constant 5.000000e-01 : f32
    %20 = vector.broadcast %cst_15 : f32 to vector<8x16xf32>
    %21 = arith.mulf %20, %17 : vector<8x16xf32>
    %22 = math.exp %21 : vector<8x16xf32>
    %23 = arith.mulf %19, %22 : vector<8x16xf32>
    %24 = arith.addf %16, %23 : vector<8x16xf32>
    %25 = arith.truncf %24 : vector<8x16xf32> to vector<8x16xbf16>
    %c0_16 = arith.constant 0 : index
    %c0_17 = arith.constant 0 : index
    %26 = vector.load %arg7[%c0_16, %c0_17] : memref<16x392xbf16, #tpu.memory_space<vmem>>, vector<16x392xbf16>
    %cst_18 = arith.constant dense<0.000000e+00> : vector<8x392xf32>
    %27 = tpu.matmul %25, %26, %cst_18 {dimension_numbers = #tpu.dot_dimension_numbers<[1], [0], [0], [1], [0, 0, 1, 1], [], []>} : vector<8x16xbf16>, vector<16x392xbf16>, vector<8x392xf32> -> vector<8x392xf32>
    %c0_19 = arith.constant 0 : index
    %c0_20 = arith.constant 0 : index
    %28 = vector.load %arg8[%c0_19, %c0_20] : memref<1x392xf32, #tpu.memory_space<vmem>>, vector<1x392xf32>
    %29 = vector.broadcast %28 : vector<1x392xf32> to vector<8x392xf32>
    %30 = arith.addf %27, %29 : vector<8x392xf32>
    %cst_21 = arith.constant 0.000000e+00 : f32
    %31 = vector.broadcast %cst_21 : f32 to vector<8x392xf32>
    %32 = arith.maximumf %30, %31 : vector<8x392xf32>
    %33 = arith.truncf %32 : vector<8x392xf32> to vector<8x392xbf16>
    %c0_22 = arith.constant 0 : index
    %c0_23 = arith.constant 0 : index
    %34 = vector.load %arg9[%c0_22, %c0_23] : memref<392x896xbf16, #tpu.memory_space<vmem>>, vector<392x896xbf16>
    %cst_24 = arith.constant dense<0.000000e+00> : vector<8x896xf32>
    %35 = tpu.matmul %33, %34, %cst_24 {dimension_numbers = #tpu.dot_dimension_numbers<[1], [0], [0], [1], [0, 0, 1, 1], [], []>} : vector<8x392xbf16>, vector<392x896xbf16>, vector<8x896xf32> -> vector<8x896xf32>
    %c0_25 = arith.constant 0 : index
    %c0_26 = arith.constant 0 : index
    %36 = vector.load %arg10[%c0_25, %c0_26] : memref<1x896xf32, #tpu.memory_space<vmem>>, vector<1x896xf32>
    %37 = vector.broadcast %36 : vector<1x896xf32> to vector<8x896xf32>
    %38 = arith.addf %35, %37 : vector<8x896xf32>
    %cst_27 = arith.constant 5.000000e-01 : f32
    %39 = vector.broadcast %cst_27 : f32 to vector<8x896xf32>
    %40 = arith.mulf %39, %38 : vector<8x896xf32>
    %41 = math.tanh %40 : vector<8x896xf32>
    %cst_28 = arith.constant 5.000000e-01 : f32
    %42 = vector.broadcast %cst_28 : f32 to vector<8x896xf32>
    %43 = arith.mulf %42, %41 : vector<8x896xf32>
    %cst_29 = arith.constant 5.000000e-01 : f32
    %44 = vector.broadcast %cst_29 : f32 to vector<8x896xf32>
    %45 = arith.addf %43, %44 : vector<8x896xf32>
    %46 = arith.truncf %45 : vector<8x896xf32> to vector<8x896xbf16>
    %c0_30 = arith.constant 0 : index
    %c0_31 = arith.constant 0 : index
    %47 = vector.load %arg11[%c0_30, %c0_31] : memref<8x896xbf16, #tpu.memory_space<vmem>>, vector<8x896xbf16>
    tpu.vector_store %arg11[%c0_30, %c0_31], %46 {strides = array<i32>} : memref<8x896xbf16, #tpu.memory_space<vmem>>, vector<8x896xbf16>,
    return
  }
  func.func @transform_0(%arg0: i32) -> (i32, i32) {
    %c0_i32 = arith.constant 0 : i32
    %c0_i32_0 = arith.constant 0 : i32
    return %arg0, %c0_i32 : i32, i32
  }
  func.func @transform_1(%arg0: i32) -> (i32, i32) {
    %c0_i32 = arith.constant 0 : i32
    %c0_i32_0 = arith.constant 0 : i32
    return %arg0, %c0_i32 : i32, i32
  }
  func.func @transform_2(%arg0: i32) -> (i32, i32) {
    %c0_i32 = arith.constant 0 : i32
    %c0_i32_0 = arith.constant 0 : i32
    %c0_i32_1 = arith.constant 0 : i32
    return %c0_i32, %c0_i32_0 : i32, i32
  }
  func.func @transform_3(%arg0: i32) -> (i32, i32) {
    %c0_i32 = arith.constant 0 : i32
    %c0_i32_0 = arith.constant 0 : i32
    %c0_i32_1 = arith.constant 0 : i32
    return %c0_i32, %c0_i32_0 : i32, i32
  }
  func.func @transform_4(%arg0: i32) -> (i32, i32) {
    %c0_i32 = arith.constant 0 : i32
    %c0_i32_0 = arith.constant 0 : i32
    %c0_i32_1 = arith.constant 0 : i32
    return %c0_i32, %c0_i32_0 : i32, i32
  }
  func.func @transform_5(%arg0: i32) -> (i32, i32) {
    %c0_i32 = arith.constant 0 : i32
    %c0_i32_0 = arith.constant 0 : i32
    %c0_i32_1 = arith.constant 0 : i32
    return %c0_i32, %c0_i32_0 : i32, i32
  }
  func.func @transform_6(%arg0: i32) -> (i32, i32) {
    %c0_i32 = arith.constant 0 : i32
    %c0_i32_0 = arith.constant 0 : i32
    %c0_i32_1 = arith.constant 0 : i32
    return %c0_i32, %c0_i32_0 : i32, i32
  }
  func.func @transform_7(%arg0: i32) -> (i32, i32) {
    %c0_i32 = arith.constant 0 : i32
    %c0_i32_0 = arith.constant 0 : i32
    %c0_i32_1 = arith.constant 0 : i32
    return %c0_i32, %c0_i32_0 : i32, i32
  }
  func.func @transform_8(%arg0: i32) -> (i32, i32) {
    %c0_i32 = arith.constant 0 : i32
    %c0_i32_0 = arith.constant 0 : i32
    %c0_i32_1 = arith.constant 0 : i32
    return %c0_i32, %c0_i32_0 : i32, i32
  }
  func.func @transform_9(%arg0: i32) -> (i32, i32) {
    %c0_i32 = arith.constant 0 : i32
    %c0_i32_0 = arith.constant 0 : i32
    %c0_i32_1 = arith.constant 0 : i32
    return %c0_i32, %c0_i32_0 : i32, i32
  }
  func.func @transform_10(%arg0: i32) -> (i32, i32) {
    %c0_i32 = arith.constant 0 : i32
    %c0_i32_0 = arith.constant 0 : i32
    return %arg0, %c0_i32 : i32, i32
  }
  func.func @transform_11(%arg0: i32) -> (i32, i32) {
    %c0_i32 = arith.constant 0 : i32
    %c0_i32_0 = arith.constant 0 : i32
    return %arg0, %c0_i32 : i32, i32
  }
}

</mosaic_0001>

<llo_original>
// kernel: vae_forward.1
$region0: #{vae_forward.1}
  #allocation0 [shape = 'u32[]', space=smem, size = 0x4, offset = 0x4, fixed_abs, tag = 'smem constant byte address 0x4 - core index']
  #allocation1 [shape = 'u32[72,128]{1,0:T(1,128)}', space=vmem, size = 0x9000, scoped, tag = 'internal scratch']
  %s0 = inlined_call_operand.vmem [shape: f32[8,784], index: 0, kind: input, shape index: {}]
  %s1 = inlined_call_operand.vmem [shape: f32[8,128], index: 1, kind: input, shape index: {}]
  %s2 = inlined_call_operand.vmem [shape: bf16[784,392], index: 2, kind: input, shape index: {}]
  %s3 = inlined_call_operand.vmem [shape: f32[1,392], index: 3, kind: input, shape index: {}]
  %s4 = inlined_call_operand.vmem [shape: bf16[392,128], index: 4, kind: input, shape index: {}]
  %s5 = inlined_call_operand.vmem [shape: f32[1,128], index: 5, kind: input, shape index: {}]
  %s6 = inlined_call_operand.vmem [shape: bf16[16,392], index: 6, kind: input, shape index: {}]
  %s7 = inlined_call_operand.vmem [shape: f32[1,392], index: 7, kind: input, shape index: {}]
  %s8 = inlined_call_operand.vmem [shape: bf16[392,896], index: 8, kind: input, shape index: {}]
  %s9 = inlined_call_operand.vmem [shape: f32[1,896], index: 9, kind: input, shape index: {}]
  %s10 = inlined_call_operand.vmem [shape: bf16[8,896], index: 10, kind: output, shape index: {0}]
  %s11 = inlined_call_operand.vmem [shape: f32[8,128], index: 11, kind: output, shape index: {1}]
  %12 = xla_tuple %s10, %s11
  %s13 = sld [smem:[#allocation0]]
  $region58: #{vae_forward.1} parent=0
    _
  %s15 = ssub.s32 1, %s13
  %s16 = scalar_select 0, %s15, %s13
  // Predicated region
  $region2: #{vae_forward.1} parent=0 // pred_check
    _
  $region3: #{vae_forward.1} parent=0 // pred_check_branch
    %18 = sbr.rel (0) target = $region5
  $region4: #{vae_forward.1} parent=0 // pred_region
    _
  $region5: #{vae_forward.1} parent=0 // pred_fallthru
    _
  // Predicated region
  $region6: #{vae_forward.1} parent=0 // pred_check
    _
  $region7: #{vae_forward.1} parent=0 // pred_check_branch
    %20 = sbr.rel (0) target = $region9
  $region8: #{vae_forward.1} parent=0 // pred_region
    _
  $region9: #{vae_forward.1} parent=0 // pred_fallthru
    _
  // Predicated region
  $region10: #{vae_forward.1} parent=0 // pred_check
    _
  $region11: #{vae_forward.1} parent=0 // pred_check_branch
    %22 = sbr.rel (0) target = $region13
  $region12: #{vae_forward.1} parent=0 // pred_region
    _
  $region13: #{vae_forward.1} parent=0 // pred_fallthru
    _
  // Predicated region
  $region14: #{vae_forward.1} parent=0 // pred_check
    _
  $region15: #{vae_forward.1} parent=0 // pred_check_branch
    %24 = sbr.rel (0) target = $region17
  $region16: #{vae_forward.1} parent=0 // pred_region
    _
  $region17: #{vae_forward.1} parent=0 // pred_fallthru
    _
  // Predicated region
  $region18: #{vae_forward.1} parent=0 // pred_check
    _
  $region19: #{vae_forward.1} parent=0 // pred_check_branch
    %26 = sbr.rel (0) target = $region21
  $region20: #{vae_forward.1} parent=0 // pred_region
    _
  $region21: #{vae_forward.1} parent=0 // pred_fallthru
    _
  // Predicated region
  $region22: #{vae_forward.1} parent=0 // pred_check
    _
  $region23: #{vae_forward.1} parent=0 // pred_check_branch
    %28 = sbr.rel (0) target = $region25
  $region24: #{vae_forward.1} parent=0 // pred_region
    _
  $region25: #{vae_forward.1} parent=0 // pred_fallthru
    _
  // Predicated region
  $region26: #{vae_forward.1} parent=0 // pred_check
    _
  $region27: #{vae_forward.1} parent=0 // pred_check_branch
    %30 = sbr.rel (0) target = $region29
  $region28: #{vae_forward.1} parent=0 // pred_region
    _
  $region29: #{vae_forward.1} parent=0 // pred_fallthru
    _
  // Predicated region
  $region30: #{vae_forward.1} parent=0 // pred_check
    _
  $region31: #{vae_forward.1} parent=0 // pred_check_branch
    %32 = sbr.rel (0) target = $region33
  $region32: #{vae_forward.1} parent=0 // pred_region
    _
  $region33: #{vae_forward.1} parent=0 // pred_fallthru
    _
  // Predicated region
  $region34: #{vae_forward.1} parent=0 // pred_check
    _
  $region35: #{vae_forward.1} parent=0 // pred_check_branch
    %34 = sbr.rel (0) target = $region37
  $region36: #{vae_forward.1} parent=0 // pred_region
    _
  $region37: #{vae_forward.1} parent=0 // pred_fallthru
    _
  // Predicated region
  $region38: #{vae_forward.1} parent=0 // pred_check
    _
  $region39: #{vae_forward.1} parent=0 // pred_check_branch
    %36 = sbr.rel (0) target = $region41
  $region40: #{vae_forward.1} parent=0 // pred_region
    _
  $region41: #{vae_forward.1} parent=0 // pred_fallthru
    _
  %v38 = vld [vmem:[%s0] sm:$0xff]
  %v39 = vld [vmem:[%s0 + $0x8] sm:$0xff]
  %v40 = vld [vmem:[%s0 + $0x10] sm:$0xff]
  %v41 = vld [vmem:[%s0 + $0x18] sm:$0xff]
  %v42 = vld [vmem:[%s0 + $0x20] sm:$0xff]
  %v43 = vld [vmem:[%s0 + $0x28] sm:$0xff]
  %v44 = vld [vmem:[%s0 + $0x30] sm:$0xff]
  %v45 = vpack.c.bf16 %v38, %v38
  %v46 = vpack.c.bf16 %v39, %v39
  %v47 = vpack.c.bf16 %v40, %v40
  %v48 = vpack.c.bf16 %v41, %v41
  %v49 = vpack.c.bf16 %v42, %v42
  %v50 = vpack.c.bf16 %v43, %v43
  %v51 = vpack.c.bf16 %v44, %v44
  %v52 = vld [vmem:[%s2] sm:$0xff]
  %v53 = vld [vmem:[%s2 + $0x8] sm:$0xff]
  %v54 = vld [vmem:[%s2 + $0x10] sm:$0xff]
  %v55 = vld [vmem:[%s2 + $0x18] sm:$0xff]
  %v56 = vld [vmem:[%s2 + $0x20] sm:$0xff]
  %v57 = vld [vmem:[%s2 + $0x28] sm:$0xff]
  %v58 = vld [vmem:[%s2 + $0x30] sm:$0xff]
  %v59 = vld [vmem:[%s2 + $0x38] sm:$0xff]
  %v60 = vld [vmem:[%s2 + $0x40] sm:$0xff]
  %v61 = vld [vmem:[%s2 + $0x48] sm:$0xff]
  %v62 = vld [vmem:[%s2 + $0x50] sm:$0xff]
  %v63 = vld [vmem:[%s2 + $0x58] sm:$0xff]
  %v64 = vld [vmem:[%s2 + $0x60] sm:$0xff]
  %v65 = vld [vmem:[%s2 + $0x68] sm:$0xff]
  %v66 = vld [vmem:[%s2 + $0x70] sm:$0xff]
  %v67 = vld [vmem:[%s2 + $0x78] sm:$0xff]
  %v68 = vld [vmem:[%s2 + $0x80] sm:$0xff]
  %v69 = vld [vmem:[%s2 + $0x88] sm:$0xff]
  %v70 = vld [vmem:[%s2 + $0x90] sm:$0xff]
  %v71 = vld [vmem:[%s2 + $0x98] sm:$0xff]
  %v72 = vld [vmem:[%s2 + $0xa0] sm:$0xff]
  %v73 = vld [vmem:[%s2 + $0xa8] sm:$0xff]
  %v74 = vld [vmem:[%s2 + $0xb0] sm:$0xff]
  %v75 = vld [vmem:[%s2 + $0xb8] sm:$0xff]
  %v76 = vld [vmem:[%s2 + $0xc0] sm:$0xff]
  %v77 = vld [vmem:[%s2 + $0xc8] sm:$0xff]
  %v78 = vld [vmem:[%s2 + $0xd0] sm:$0xff]
  %v79 = vld [vmem:[%s2 + $0xd8] sm:$0xff]
  %v80 = vld [vmem:[%s2 + $0xe0] sm:$0xff]
  %v81 = vld [vmem:[%s2 + $0xe8] sm:$0xff]
  %v82 = vld [vmem:[%s2 + $0xf0] sm:$0xff]
  %v83 = vld [vmem:[%s2 + $0xf8] sm:$0xff]
  %v84 = vld [vmem:[%s2 + $0x100] sm:$0xff]
  %v85 = vld [vmem:[%s2 + $0x108] sm:$0xff]
  %v86 = vld [vmem:[%s2 + $0x110] sm:$0xff]
  %v87 = vld [vmem:[%s2 + $0x118] sm:$0xff]
  %v88 = vld [vmem:[%s2 + $0x120] sm:$0xff]
  %v89 = vld [vmem:[%s2 + $0x128] sm:$0xff]
  %v90 = vld [vmem:[%s2 + $0x130] sm:$0xff]
  %v91 = vld [vmem:[%s2 + $0x138] sm:$0xff]
  %v92 = vld [vmem:[%s2 + $0x140] sm:$0xff]
  %v93 = vld [vmem:[%s2 + $0x148] sm:$0xff]
  %v94 = vld [vmem:[%s2 + $0x150] sm:$0xff]
  %v95 = vld [vmem:[%s2 + $0x158] sm:$0xff]
  %v96 = vld [vmem:[%s2 + $0x160] sm:$0xff]
  %v97 = vld [vmem:[%s2 + $0x168] sm:$0xff]
  %v98 = vld [vmem:[%s2 + $0x170] sm:$0xff]
  %v99 = vld [vmem:[%s2 + $0x178] sm:$0xff]
  %v100 = vld [vmem:[%s2 + $0x180] sm:$0xff]
  %v101 = vld [vmem:[%s2 + $0x188] sm:$0xff]
  %v102 = vld [vmem:[%s2 + $0x190] sm:$0xff]
  %v103 = vld [vmem:[%s2 + $0x198] sm:$0xff]
  %v104 = vld [vmem:[%s2 + $0x1a0] sm:$0xff]
  %v105 = vld [vmem:[%s2 + $0x1a8] sm:$0xff]
  %v106 = vld [vmem:[%s2 + $0x1b0] sm:$0xff]
  %v107 = vld [vmem:[%s2 + $0x1b8] sm:$0xff]
  %v108 = vld [vmem:[%s2 + $0x1c0] sm:$0xff]
  %v109 = vld [vmem:[%s2 + $0x1c8] sm:$0xff]
  %v110 = vld [vmem:[%s2 + $0x1d0] sm:$0xff]
  %v111 = vld [vmem:[%s2 + $0x1d8] sm:$0xff]
  %v112 = vld [vmem:[%s2 + $0x1e0] sm:$0xff]
  %v113 = vld [vmem:[%s2 + $0x1e8] sm:$0xff]
  %v114 = vld [vmem:[%s2 + $0x1f0] sm:$0xff]
  %v115 = vld [vmem:[%s2 + $0x1f8] sm:$0xff]
  %v116 = vld [vmem:[%s2 + $0x200] sm:$0xff]
  %v117 = vld [vmem:[%s2 + $0x208] sm:$0xff]
  %v118 = vld [vmem:[%s2 + $0x210] sm:$0xff]
  %v119 = vld [vmem:[%s2 + $0x218] sm:$0xff]
  %v120 = vld [vmem:[%s2 + $0x220] sm:$0xff]
  %v121 = vld [vmem:[%s2 + $0x228] sm:$0xff]
  %v122 = vld [vmem:[%s2 + $0x230] sm:$0xff]
  %v123 = vld [vmem:[%s2 + $0x238] sm:$0xff]
  %v124 = vld [vmem:[%s2 + $0x240] sm:$0xff]
  %v125 = vld [vmem:[%s2 + $0x248] sm:$0xff]
  %v126 = vld [vmem:[%s2 + $0x250] sm:$0xff]
  %v127 = vld [vmem:[%s2 + $0x258] sm:$0xff]
  %v128 = vld [vmem:[%s2 + $0x260] sm:$0xff]
  %v129 = vld [vmem:[%s2 + $0x268] sm:$0xff]
  %v130 = vld [vmem:[%s2 + $0x270] sm:$0xff]
  %v131 = vld [vmem:[%s2 + $0x278] sm:$0xff]
  %v132 = vld [vmem:[%s2 + $0x280] sm:$0xff]
  %v133 = vld [vmem:[%s2 + $0x288] sm:$0xff]
  %v134 = vld [vmem:[%s2 + $0x290] sm:$0xff]
  %v135 = vld [vmem:[%s2 + $0x298] sm:$0xff]
  %v136 = vld [vmem:[%s2 + $0x2a0] sm:$0xff]
  %v137 = vld [vmem:[%s2 + $0x2a8] sm:$0xff]
  %v138 = vld [vmem:[%s2 + $0x2b0] sm:$0xff]
  %v139 = vld [vmem:[%s2 + $0x2b8] sm:$0xff]
  %v140 = vld [vmem:[%s2 + $0x2c0] sm:$0xff]
  %v141 = vld [vmem:[%s2 + $0x2c8] sm:$0xff]
  %v142 = vld [vmem:[%s2 + $0x2d0] sm:$0xff]
  %v143 = vld [vmem:[%s2 + $0x2d8] sm:$0xff]
  %v144 = vld [vmem:[%s2 + $0x2e0] sm:$0xff]
  %v145 = vld [vmem:[%s2 + $0x2e8] sm:$0xff]
  %v146 = vld [vmem:[%s2 + $0x2f0] sm:$0xff]
  %v147 = vld [vmem:[%s2 + $0x2f8] sm:$0xff]
  %v148 = vld [vmem:[%s2 + $0x300] sm:$0xff]
  %v149 = vld [vmem:[%s2 + $0x308] sm:$0xff]
  %v150 = vld [vmem:[%s2 + $0x310] sm:$0xff]
  %v151 = vld [vmem:[%s2 + $0x318] sm:$0xff]
  %v152 = vld [vmem:[%s2 + $0x320] sm:$0xff]
  %v153 = vld [vmem:[%s2 + $0x328] sm:$0xff]
  %v154 = vld [vmem:[%s2 + $0x330] sm:$0xff]
  %v155 = vld [vmem:[%s2 + $0x338] sm:$0xff]
  %v156 = vld [vmem:[%s2 + $0x340] sm:$0xff]
  %v157 = vld [vmem:[%s2 + $0x348] sm:$0xff]
  %v158 = vld [vmem:[%s2 + $0x350] sm:$0xff]
  %v159 = vld [vmem:[%s2 + $0x358] sm:$0xff]
  %v160 = vld [vmem:[%s2 + $0x360] sm:$0xff]
  %v161 = vld [vmem:[%s2 + $0x368] sm:$0xff]
  %v162 = vld [vmem:[%s2 + $0x370] sm:$0xff]
  %v163 = vld [vmem:[%s2 + $0x378] sm:$0xff]
  %v164 = vld [vmem:[%s2 + $0x380] sm:$0xff]
  %v165 = vld [vmem:[%s2 + $0x388] sm:$0xff]
  %v166 = vld [vmem:[%s2 + $0x390] sm:$0xff]
  %v167 = vld [vmem:[%s2 + $0x398] sm:$0xff]
  %v168 = vld [vmem:[%s2 + $0x3a0] sm:$0xff]
  %v169 = vld [vmem:[%s2 + $0x3a8] sm:$0xff]
  %v170 = vld [vmem:[%s2 + $0x3b0] sm:$0xff]
  %v171 = vld [vmem:[%s2 + $0x3b8] sm:$0xff]
  %v172 = vld [vmem:[%s2 + $0x3c0] sm:$0xff]
  %v173 = vld [vmem:[%s2 + $0x3c8] sm:$0xff]
  %v174 = vld [vmem:[%s2 + $0x3d0] sm:$0xff]
  %v175 = vld [vmem:[%s2 + $0x3d8] sm:$0xff]
  %v176 = vld [vmem:[%s2 + $0x3e0] sm:$0xff]
  %v177 = vld [vmem:[%s2 + $0x3e8] sm:$0xff]
  %v178 = vld [vmem:[%s2 + $0x3f0] sm:$0xff]
  %v179 = vld [vmem:[%s2 + $0x3f8] sm:$0xff]
  %v180 = vld [vmem:[%s2 + $0x400] sm:$0xff]
  %v181 = vld [vmem:[%s2 + $0x408] sm:$0xff]
  %v182 = vld [vmem:[%s2 + $0x410] sm:$0xff]
  %v183 = vld [vmem:[%s2 + $0x418] sm:$0xff]
  %v184 = vld [vmem:[%s2 + $0x420] sm:$0xff]
  %v185 = vld [vmem:[%s2 + $0x428] sm:$0xff]
  %v186 = vld [vmem:[%s2 + $0x430] sm:$0xff]
  %v187 = vld [vmem:[%s2 + $0x438] sm:$0xff]
  %v188 = vld [vmem:[%s2 + $0x440] sm:$0xff]
  %v189 = vld [vmem:[%s2 + $0x448] sm:$0xff]
  %v190 = vld [vmem:[%s2 + $0x450] sm:$0xff]
  %v191 = vld [vmem:[%s2 + $0x458] sm:$0xff]
  %v192 = vld [vmem:[%s2 + $0x460] sm:$0xff]
  %v193 = vld [vmem:[%s2 + $0x468] sm:$0xff]
  %v194 = vld [vmem:[%s2 + $0x470] sm:$0xff]
  %v195 = vld [vmem:[%s2 + $0x478] sm:$0xff]
  %v196 = vld [vmem:[%s2 + $0x480] sm:$0xff]
  %v197 = vld [vmem:[%s2 + $0x488] sm:$0xff]
  %v198 = vld [vmem:[%s2 + $0x490] sm:$0xff]
  %v199 = vld [vmem:[%s2 + $0x498] sm:$0xff]
  %v200 = vld [vmem:[%s2 + $0x4a0] sm:$0xff]
  %v201 = vld [vmem:[%s2 + $0x4a8] sm:$0xff]
  %v202 = vld [vmem:[%s2 + $0x4b0] sm:$0xff]
  %v203 = vld [vmem:[%s2 + $0x4b8] sm:$0xff]
  %v204 = vld [vmem:[%s2 + $0x4c0] sm:$0xff]
  %v205 = vld [vmem:[%s2 + $0x4c8] sm:$0xff]
  %v206 = vld [vmem:[%s2 + $0x4d0] sm:$0xff]
  %v207 = vld [vmem:[%s2 + $0x4d8] sm:$0xff]
  %v208 = vld [vmem:[%s2 + $0x4e0] sm:$0xff]
  %v209 = vld [vmem:[%s2 + $0x4e8] sm:$0xff]
  %v210 = vld [vmem:[%s2 + $0x4f0] sm:$0xff]
  %v211 = vld [vmem:[%s2 + $0x4f8] sm:$0xff]
  %v212 = vld [vmem:[%s2 + $0x500] sm:$0xff]
  %v213 = vld [vmem:[%s2 + $0x508] sm:$0xff]
  %v214 = vld [vmem:[%s2 + $0x510] sm:$0xff]
  %v215 = vld [vmem:[%s2 + $0x518] sm:$0xff]
  %v216 = vld [vmem:[%s2 + $0x520] sm:$0xff]
  %v217 = vld [vmem:[%s2 + $0x528] sm:$0xff]
  %v218 = vld [vmem:[%s2 + $0x530] sm:$0xff]
  %v219 = vld [vmem:[%s2 + $0x538] sm:$0xff]
  %v220 = vld [vmem:[%s2 + $0x540] sm:$0xff]
  %v221 = vld [vmem:[%s2 + $0x548] sm:$0xff]
  %v222 = vld [vmem:[%s2 + $0x550] sm:$0xff]
  %v223 = vld [vmem:[%s2 + $0x558] sm:$0xff]
  %v224 = vld [vmem:[%s2 + $0x560] sm:$0xff]
  %v225 = vld [vmem:[%s2 + $0x568] sm:$0xff]
  %v226 = vld [vmem:[%s2 + $0x570] sm:$0xff]
  %v227 = vld [vmem:[%s2 + $0x578] sm:$0xff]
  %v228 = vld [vmem:[%s2 + $0x580] sm:$0xff]
  %v229 = vld [vmem:[%s2 + $0x588] sm:$0xff]
  %v230 = vld [vmem:[%s2 + $0x590] sm:$0xff]
  %v231 = vld [vmem:[%s2 + $0x598] sm:$0xff]
  %v232 = vld [vmem:[%s2 + $0x5a0] sm:$0xff]
  %v233 = vld [vmem:[%s2 + $0x5a8] sm:$0xff]
  %v234 = vld [vmem:[%s2 + $0x5b0] sm:$0xff]
  %v235 = vld [vmem:[%s2 + $0x5b8] sm:$0xff]
  %v236 = vld [vmem:[%s2 + $0x5c0] sm:$0xff]
  %v237 = vld [vmem:[%s2 + $0x5c8] sm:$0xff]
  %v238 = vld [vmem:[%s2 + $0x5d0] sm:$0xff]
  %v239 = vld [vmem:[%s2 + $0x5d8] sm:$0xff]
  %v240 = vld [vmem:[%s2 + $0x5e0] sm:$0xff]
  %v241 = vld [vmem:[%s2 + $0x5e8] sm:$0xff]
  %v242 = vld [vmem:[%s2 + $0x5f0] sm:$0xff]
  %v243 = vld [vmem:[%s2 + $0x5f8] sm:$0xff]
  %v244 = vld [vmem:[%s2 + $0x600] sm:$0xff]
  %v245 = vld [vmem:[%s2 + $0x608] sm:$0xff]
  %v246 = vld [vmem:[%s2 + $0x610] sm:$0xff]
  %v247 = vld [vmem:[%s2 + $0x618] sm:$0xff]
  %v248 = vld [vmem:[%s3] sm:$0xf]
  %v250 = vperm.slane %v248, 0
  %v251 = vperm.slane %v248, 1
  %v252 = vperm.slane %v248, 2
  %v253 = vperm.slane %v248, 3
  %v454 = vunpack.c.l.b16 %v52
  %v455 = vunpack.c.h.b16 %v52
  %v456 = vunpack.c.l.b16 %v53
  %v457 = vunpack.c.h.b16 %v53
  %v458 = vunpack.c.l.b16 %v54
  %v459 = vunpack.c.h.b16 %v54
  %v460 = vunpack.c.l.b16 %v55
  %v461 = vunpack.c.h.b16 %v55
  %v462 = vunpack.c.l.b16 %v56
  %v463 = vunpack.c.h.b16 %v56
  %v464 = vunpack.c.l.b16 %v57
  %v465 = vunpack.c.h.b16 %v57
  %v466 = vunpack.c.l.b16 %v58
  %v467 = vunpack.c.h.b16 %v58
  %v468 = vunpack.c.l.b16 %v59
  %v469 = vunpack.c.h.b16 %v59
  %v470 = vunpack.c.l.b16 %v60
  %v471 = vunpack.c.h.b16 %v60
  %v472 = vunpack.c.l.b16 %v61
  %v473 = vunpack.c.h.b16 %v61
  %v474 = vunpack.c.l.b16 %v62
  %v475 = vunpack.c.h.b16 %v62
  %v476 = vunpack.c.l.b16 %v63
  %v477 = vunpack.c.h.b16 %v63
  %v478 = vunpack.c.l.b16 %v64
  %v479 = vunpack.c.h.b16 %v64
  %v480 = vunpack.c.l.b16 %v65
  %v481 = vunpack.c.h.b16 %v65
  %v482 = vunpack.c.l.b16 %v66
  %v483 = vunpack.c.h.b16 %v66
  %v484 = vunpack.c.l.b16 %v67
  %v485 = vunpack.c.h.b16 %v67
  %v486 = vunpack.c.l.b16 %v68
  %v487 = vunpack.c.h.b16 %v68
  %v488 = vunpack.c.l.b16 %v69
  %v489 = vunpack.c.h.b16 %v69
  %v490 = vunpack.c.l.b16 %v70
  %v491 = vunpack.c.h.b16 %v70
  %v492 = vunpack.c.l.b16 %v71
  %v493 = vunpack.c.h.b16 %v71
  %v494 = vunpack.c.l.b16 %v72
  %v495 = vunpack.c.h.b16 %v72
  %v496 = vunpack.c.l.b16 %v73
  %v497 = vunpack.c.h.b16 %v73
  %v498 = vunpack.c.l.b16 %v74
  %v499 = vunpack.c.h.b16 %v74
  %v500 = vunpack.c.l.b16 %v75
  %v501 = vunpack.c.h.b16 %v75
  %v502 = vunpack.c.l.b16 %v76
  %v503 = vunpack.c.h.b16 %v76
  %v504 = vunpack.c.l.b16 %v77
  %v505 = vunpack.c.h.b16 %v77
  %v506 = vunpack.c.l.b16 %v78
  %v507 = vunpack.c.h.b16 %v78
  %v508 = vunpack.c.l.b16 %v79
  %v509 = vunpack.c.h.b16 %v79
  %v510 = vunpack.c.l.b16 %v80
  %v511 = vunpack.c.h.b16 %v80
  %v512 = vunpack.c.l.b16 %v81
  %v513 = vunpack.c.h.b16 %v81
  %v514 = vunpack.c.l.b16 %v82
  %v515 = vunpack.c.h.b16 %v82
  %v516 = vunpack.c.l.b16 %v83
  %v517 = vunpack.c.h.b16 %v83
  %v518 = vunpack.c.l.b16 %v84
  %v519 = vunpack.c.h.b16 %v84
  %v520 = vunpack.c.l.b16 %v85
  %v521 = vunpack.c.h.b16 %v85
  %v522 = vunpack.c.l.b16 %v86
  %v523 = vunpack.c.h.b16 %v86
  %v524 = vunpack.c.l.b16 %v87
  %v525 = vunpack.c.h.b16 %v87
  %v526 = vunpack.c.l.b16 %v88
  %v527 = vunpack.c.h.b16 %v88
  %v528 = vunpack.c.l.b16 %v89
  %v529 = vunpack.c.h.b16 %v89
  %v530 = vunpack.c.l.b16 %v90
  %v531 = vunpack.c.h.b16 %v90
  %v532 = vunpack.c.l.b16 %v91
  %v533 = vunpack.c.h.b16 %v91
  %v534 = vunpack.c.l.b16 %v92
  %v535 = vunpack.c.h.b16 %v92
  %v536 = vunpack.c.l.b16 %v93
  %v537 = vunpack.c.h.b16 %v93
  %v538 = vunpack.c.l.b16 %v94
  %v539 = vunpack.c.h.b16 %v94
  %v540 = vunpack.c.l.b16 %v95
  %v541 = vunpack.c.h.b16 %v95
  %v542 = vunpack.c.l.b16 %v96
  %v543 = vunpack.c.h.b16 %v96
  %v544 = vunpack.c.l.b16 %v97
  %v545 = vunpack.c.h.b16 %v97
  %v546 = vunpack.c.l.b16 %v98
  %v547 = vunpack.c.h.b16 %v98
  %v548 = vunpack.c.l.b16 %v99
  %v549 = vunpack.c.h.b16 %v99
  %v550 = vunpack.c.l.b16 %v100
  %v551 = vunpack.c.h.b16 %v100
  %v552 = vunpack.c.l.b16 %v101
  %v553 = vunpack.c.h.b16 %v101
  %v554 = vunpack.c.l.b16 %v102
  %v555 = vunpack.c.h.b16 %v102
  %v556 = vunpack.c.l.b16 %v103
  %v557 = vunpack.c.h.b16 %v103
  %v558 = vunpack.c.l.b16 %v104
  %v559 = vunpack.c.h.b16 %v104
  %v560 = vunpack.c.l.b16 %v105
  %v561 = vunpack.c.h.b16 %v105
  %v562 = vunpack.c.l.b16 %v106
  %v563 = vunpack.c.h.b16 %v106
  %v564 = vunpack.c.l.b16 %v107
  %v565 = vunpack.c.h.b16 %v107
  %v566 = vunpack.c.l.b16 %v108
  %v567 = vunpack.c.h.b16 %v108
  %v568 = vunpack.c.l.b16 %v109
  %v569 = vunpack.c.h.b16 %v109
  %v570 = vunpack.c.l.b16 %v110
  %v571 = vunpack.c.h.b16 %v110
  %v572 = vunpack.c.l.b16 %v111
  %v573 = vunpack.c.h.b16 %v111
  %v574 = vunpack.c.l.b16 %v112
  %v575 = vunpack.c.h.b16 %v112
  %v576 = vunpack.c.l.b16 %v113
  %v577 = vunpack.c.h.b16 %v113
  %v578 = vunpack.c.l.b16 %v114
  %v579 = vunpack.c.h.b16 %v114
  %v580 = vunpack.c.l.b16 %v115
  %v581 = vunpack.c.h.b16 %v115
  %v582 = vunpack.c.l.b16 %v116
  %v583 = vunpack.c.h.b16 %v116
  %v584 = vunpack.c.l.b16 %v117
  %v585 = vunpack.c.h.b16 %v117
  %v586 = vunpack.c.l.b16 %v118
  %v587 = vunpack.c.h.b16 %v118
  %v588 = vunpack.c.l.b16 %v119
  %v589 = vunpack.c.h.b16 %v119
  %v590 = vunpack.c.l.b16 %v120
  %v591 = vunpack.c.h.b16 %v120
  %v592 = vunpack.c.l.b16 %v121
  %v593 = vunpack.c.h.b16 %v121
  %v594 = vunpack.c.l.b16 %v122
  %v595 = vunpack.c.h.b16 %v122
  %v596 = vunpack.c.l.b16 %v123
  %v597 = vunpack.c.h.b16 %v123
  %v598 = vunpack.c.l.b16 %v124
  %v599 = vunpack.c.h.b16 %v124
  %v600 = vunpack.c.l.b16 %v125
  %v601 = vunpack.c.h.b16 %v125
  %v602 = vunpack.c.l.b16 %v126
  %v603 = vunpack.c.h.b16 %v126
  %v604 = vunpack.c.l.b16 %v127
  %v605 = vunpack.c.h.b16 %v127
  %v606 = vunpack.c.l.b16 %v128
  %v607 = vunpack.c.h.b16 %v128
  %v608 = vunpack.c.l.b16 %v129
  %v609 = vunpack.c.h.b16 %v129
  %v610 = vunpack.c.l.b16 %v130
  %v611 = vunpack.c.h.b16 %v130
  %v612 = vunpack.c.l.b16 %v131
  %v613 = vunpack.c.h.b16 %v131
  %v614 = vunpack.c.l.b16 %v132
  %v615 = vunpack.c.h.b16 %v132
  %v616 = vunpack.c.l.b16 %v133
  %v617 = vunpack.c.h.b16 %v133
  %v618 = vunpack.c.l.b16 %v134
  %v619 = vunpack.c.h.b16 %v134
  %v620 = vunpack.c.l.b16 %v135
  %v621 = vunpack.c.h.b16 %v135
  %v622 = vunpack.c.l.b16 %v136
  %v623 = vunpack.c.h.b16 %v136
  %v624 = vunpack.c.l.b16 %v137
  %v625 = vunpack.c.h.b16 %v137
  %v626 = vunpack.c.l.b16 %v138
  %v627 = vunpack.c.h.b16 %v138
  %v628 = vunpack.c.l.b16 %v139
  %v629 = vunpack.c.h.b16 %v139
  %v630 = vunpack.c.l.b16 %v140
  %v631 = vunpack.c.h.b16 %v140
  %v632 = vunpack.c.l.b16 %v141
  %v633 = vunpack.c.h.b16 %v141
  %v634 = vunpack.c.l.b16 %v142
  %v635 = vunpack.c.h.b16 %v142
  %v636 = vunpack.c.l.b16 %v143
  %v637 = vunpack.c.h.b16 %v143
  %v638 = vunpack.c.l.b16 %v144
  %v639 = vunpack.c.h.b16 %v144
  %v640 = vunpack.c.l.b16 %v145
  %v641 = vunpack.c.h.b16 %v145
  %v642 = vunpack.c.l.b16 %v146
  %v643 = vunpack.c.h.b16 %v146
  %v644 = vunpack.c.l.b16 %v147
  %v645 = vunpack.c.h.b16 %v147
  %v646 = vunpack.c.l.b16 %v148
  %v647 = vunpack.c.h.b16 %v148
  %v648 = vunpack.c.l.b16 %v149
  %v649 = vunpack.c.h.b16 %v149
  %v650 = vunpack.c.l.b16 %v150
  %v651 = vunpack.c.h.b16 %v150
  %v652 = vunpack.c.l.b16 %v151
  %v653 = vunpack.c.h.b16 %v151
  %v654 = vunpack.c.l.b16 %v152
  %v655 = vunpack.c.h.b16 %v152
  %v656 = vunpack.c.l.b16 %v153
  %v657 = vunpack.c.h.b16 %v153
  %v658 = vunpack.c.l.b16 %v154
  %v659 = vunpack.c.h.b16 %v154
  %v660 = vunpack.c.l.b16 %v155
  %v661 = vunpack.c.h.b16 %v155
  %v662 = vunpack.c.l.b16 %v156
  %v663 = vunpack.c.h.b16 %v156
  %v664 = vunpack.c.l.b16 %v157
  %v665 = vunpack.c.h.b16 %v157
  %v666 = vunpack.c.l.b16 %v158
  %v667 = vunpack.c.h.b16 %v158
  %v668 = vunpack.c.l.b16 %v159
  %v669 = vunpack.c.h.b16 %v159
  %v670 = vunpack.c.l.b16 %v160
  %v671 = vunpack.c.h.b16 %v160
  %v672 = vunpack.c.l.b16 %v161
  %v673 = vunpack.c.h.b16 %v161
  %v674 = vunpack.c.l.b16 %v162
  %v675 = vunpack.c.h.b16 %v162
  %v676 = vunpack.c.l.b16 %v163
  %v677 = vunpack.c.h.b16 %v163
  %v678 = vunpack.c.l.b16 %v164
  %v679 = vunpack.c.h.b16 %v164
  %v680 = vunpack.c.l.b16 %v165
  %v681 = vunpack.c.h.b16 %v165
  %v682 = vunpack.c.l.b16 %v166
  %v683 = vunpack.c.h.b16 %v166
  %v684 = vunpack.c.l.b16 %v167
  %v685 = vunpack.c.h.b16 %v167
  %v686 = vunpack.c.l.b16 %v168
  %v687 = vunpack.c.h.b16 %v168
  %v688 = vunpack.c.l.b16 %v169
  %v689 = vunpack.c.h.b16 %v169
  %v690 = vunpack.c.l.b16 %v170
  %v691 = vunpack.c.h.b16 %v170
  %v692 = vunpack.c.l.b16 %v171
  %v693 = vunpack.c.h.b16 %v171
  %v694 = vunpack.c.l.b16 %v172
  %v695 = vunpack.c.h.b16 %v172
  %v696 = vunpack.c.l.b16 %v173
  %v697 = vunpack.c.h.b16 %v173
  %v698 = vunpack.c.l.b16 %v174
  %v699 = vunpack.c.h.b16 %v174
  %v700 = vunpack.c.l.b16 %v175
  %v701 = vunpack.c.h.b16 %v175
  %v702 = vunpack.c.l.b16 %v176
  %v703 = vunpack.c.h.b16 %v176
  %v704 = vunpack.c.l.b16 %v177
  %v705 = vunpack.c.h.b16 %v177
  %v706 = vunpack.c.l.b16 %v178
  %v707 = vunpack.c.h.b16 %v178
  %v708 = vunpack.c.l.b16 %v179
  %v709 = vunpack.c.h.b16 %v179
  %v710 = vunpack.c.l.b16 %v180
  %v711 = vunpack.c.h.b16 %v180
  %v712 = vunpack.c.l.b16 %v181
  %v713 = vunpack.c.h.b16 %v181
  %v714 = vunpack.c.l.b16 %v182
  %v715 = vunpack.c.h.b16 %v182
  %v716 = vunpack.c.l.b16 %v183
  %v717 = vunpack.c.h.b16 %v183
  %v718 = vunpack.c.l.b16 %v184
  %v719 = vunpack.c.h.b16 %v184
  %v720 = vunpack.c.l.b16 %v185
  %v721 = vunpack.c.h.b16 %v185
  %v722 = vunpack.c.l.b16 %v186
  %v723 = vunpack.c.h.b16 %v186
  %v724 = vunpack.c.l.b16 %v187
  %v725 = vunpack.c.h.b16 %v187
  %v726 = vunpack.c.l.b16 %v188
  %v727 = vunpack.c.h.b16 %v188
  %v728 = vunpack.c.l.b16 %v189
  %v729 = vunpack.c.h.b16 %v189
  %v730 = vunpack.c.l.b16 %v190
  %v731 = vunpack.c.h.b16 %v190
  %v732 = vunpack.c.l.b16 %v191
  %v733 = vunpack.c.h.b16 %v191
  %v734 = vunpack.c.l.b16 %v192
  %v735 = vunpack.c.h.b16 %v192
  %v736 = vunpack.c.l.b16 %v193
  %v737 = vunpack.c.h.b16 %v193
  %v738 = vunpack.c.l.b16 %v194
  %v739 = vunpack.c.h.b16 %v194
  %v740 = vunpack.c.l.b16 %v195
  %v741 = vunpack.c.h.b16 %v195
  %v742 = vunpack.c.l.b16 %v196
  %v743 = vunpack.c.h.b16 %v196
  %v744 = vunpack.c.l.b16 %v197
  %v745 = vunpack.c.h.b16 %v197
  %v746 = vunpack.c.l.b16 %v198
  %v747 = vunpack.c.h.b16 %v198
  %v748 = vunpack.c.l.b16 %v199
  %v749 = vunpack.c.h.b16 %v199
  %v750 = vunpack.c.l.b16 %v200
  %v751 = vunpack.c.h.b16 %v200
  %v752 = vunpack.c.l.b16 %v201
  %v753 = vunpack.c.h.b16 %v201
  %v754 = vunpack.c.l.b16 %v202
  %v755 = vunpack.c.h.b16 %v202
  %v756 = vunpack.c.l.b16 %v203
  %v757 = vunpack.c.h.b16 %v203
  %v758 = vunpack.c.l.b16 %v204
  %v759 = vunpack.c.h.b16 %v204
  %v760 = vunpack.c.l.b16 %v205
  %v761 = vunpack.c.h.b16 %v205
  %v762 = vunpack.c.l.b16 %v206
  %v763 = vunpack.c.h.b16 %v206
  %v764 = vunpack.c.l.b16 %v207
  %v765 = vunpack.c.h.b16 %v207
  %v766 = vunpack.c.l.b16 %v208
  %v767 = vunpack.c.h.b16 %v208
  %v768 = vunpack.c.l.b16 %v209
  %v769 = vunpack.c.h.b16 %v209
  %v770 = vunpack.c.l.b16 %v210
  %v771 = vunpack.c.h.b16 %v210
  %v772 = vunpack.c.l.b16 %v211
  %v773 = vunpack.c.h.b16 %v211
  %v774 = vunpack.c.l.b16 %v212
  %v775 = vunpack.c.h.b16 %v212
  %v776 = vunpack.c.l.b16 %v213
  %v777 = vunpack.c.h.b16 %v213
  %v778 = vunpack.c.l.b16 %v214
  %v779 = vunpack.c.h.b16 %v214
  %v780 = vunpack.c.l.b16 %v215
  %v781 = vunpack.c.h.b16 %v215
  %v782 = vunpack.c.l.b16 %v216
  %v783 = vunpack.c.h.b16 %v216
  %v784 = vunpack.c.l.b16 %v217
  %v785 = vunpack.c.h.b16 %v217
  %v786 = vunpack.c.l.b16 %v218
  %v787 = vunpack.c.h.b16 %v218
  %v788 = vunpack.c.l.b16 %v219
  %v789 = vunpack.c.h.b16 %v219
  %v790 = vunpack.c.l.b16 %v220
  %v791 = vunpack.c.h.b16 %v220
  %v792 = vunpack.c.l.b16 %v221
  %v793 = vunpack.c.h.b16 %v221
  %v794 = vunpack.c.l.b16 %v222
  %v795 = vunpack.c.h.b16 %v222
  %v796 = vunpack.c.l.b16 %v223
  %v797 = vunpack.c.h.b16 %v223
  %v798 = vunpack.c.l.b16 %v224
  %v799 = vunpack.c.h.b16 %v224
  %v800 = vunpack.c.l.b16 %v225
  %v801 = vunpack.c.h.b16 %v225
  %v802 = vunpack.c.l.b16 %v226
  %v803 = vunpack.c.h.b16 %v226
  %v804 = vunpack.c.l.b16 %v227
  %v805 = vunpack.c.h.b16 %v227
  %v806 = vunpack.c.l.b16 %v228
  %v807 = vunpack.c.h.b16 %v228
  %v808 = vunpack.c.l.b16 %v229
  %v809 = vunpack.c.h.b16 %v229
  %v810 = vunpack.c.l.b16 %v230
  %v811 = vunpack.c.h.b16 %v230
  %v812 = vunpack.c.l.b16 %v231
  %v813 = vunpack.c.h.b16 %v231
  %v814 = vunpack.c.l.b16 %v232
  %v815 = vunpack.c.h.b16 %v232
  %v816 = vunpack.c.l.b16 %v233
  %v817 = vunpack.c.h.b16 %v233
  %v818 = vunpack.c.l.b16 %v234
  %v819 = vunpack.c.h.b16 %v234
  %v820 = vunpack.c.l.b16 %v235
  %v821 = vunpack.c.h.b16 %v235
  %v822 = vunpack.c.l.b16 %v236
  %v823 = vunpack.c.h.b16 %v236
  %v824 = vunpack.c.l.b16 %v237
  %v825 = vunpack.c.h.b16 %v237
  %v826 = vunpack.c.l.b16 %v238
  %v827 = vunpack.c.h.b16 %v238
  %v828 = vunpack.c.l.b16 %v239
  %v829 = vunpack.c.h.b16 %v239
  %v830 = vunpack.c.l.b16 %v240
  %v831 = vunpack.c.h.b16 %v240
  %v832 = vunpack.c.l.b16 %v241
  %v833 = vunpack.c.h.b16 %v241
  %v834 = vunpack.c.l.b16 %v242
  %v835 = vunpack.c.h.b16 %v242
  %v836 = vunpack.c.l.b16 %v243
  %v837 = vunpack.c.h.b16 %v243
  %v838 = vunpack.c.l.b16 %v244
  %v839 = vunpack.c.h.b16 %v244
  %v840 = vunpack.c.l.b16 %v245
  %v841 = vunpack.c.h.b16 %v245
  %v842 = vunpack.c.l.b16 %v246
  %v843 = vunpack.c.h.b16 %v246
  %v844 = vunpack.c.l.b16 %v247
  %v845 = vunpack.c.h.b16 %v247
  %v846 = vpack.c.b16 %v458, %v454
  %v847 = vpack.c.b16 %v459, %v455
  %v848 = vpack.c.b16 %v460, %v456
  %v849 = vpack.c.b16 %v461, %v457
  %v850 = vpack.c.b16 %v466, %v462
  %v851 = vpack.c.b16 %v467, %v463
  %v852 = vpack.c.b16 %v468, %v464
  %v853 = vpack.c.b16 %v469, %v465
  %v854 = vpack.c.b16 %v474, %v470
  %v855 = vpack.c.b16 %v475, %v471
  %v856 = vpack.c.b16 %v476, %v472
  %v857 = vpack.c.b16 %v477, %v473
  %v858 = vpack.c.b16 %v482, %v478
  %v859 = vpack.c.b16 %v483, %v479
  %v860 = vpack.c.b16 %v484, %v480
  %v861 = vpack.c.b16 %v485, %v481
  %v862 = vpack.c.b16 %v490, %v486
  %v863 = vpack.c.b16 %v491, %v487
  %v864 = vpack.c.b16 %v492, %v488
  %v865 = vpack.c.b16 %v493, %v489
  %v866 = vpack.c.b16 %v498, %v494
  %v867 = vpack.c.b16 %v499, %v495
  %v868 = vpack.c.b16 %v500, %v496
  %v869 = vpack.c.b16 %v501, %v497
  %v870 = vpack.c.b16 %v506, %v502
  %v871 = vpack.c.b16 %v507, %v503
  %v872 = vpack.c.b16 %v508, %v504
  %v873 = vpack.c.b16 %v509, %v505
  %v874 = vpack.c.b16 %v514, %v510
  %v875 = vpack.c.b16 %v515, %v511
  %v876 = vpack.c.b16 %v516, %v512
  %v877 = vpack.c.b16 %v517, %v513
  %v878 = vpack.c.b16 %v522, %v518
  %v879 = vpack.c.b16 %v523, %v519
  %v880 = vpack.c.b16 %v524, %v520
  %v881 = vpack.c.b16 %v525, %v521
  %v882 = vpack.c.b16 %v530, %v526
  %v883 = vpack.c.b16 %v531, %v527
  %v884 = vpack.c.b16 %v532, %v528
  %v885 = vpack.c.b16 %v533, %v529
  %v886 = vpack.c.b16 %v538, %v534
  %v887 = vpack.c.b16 %v539, %v535
  %v888 = vpack.c.b16 %v540, %v536
  %v889 = vpack.c.b16 %v541, %v537
  %v890 = vpack.c.b16 %v546, %v542
  %v891 = vpack.c.b16 %v547, %v543
  %v892 = vpack.c.b16 %v548, %v544
  %v893 = vpack.c.b16 %v549, %v545
  %v894 = vpack.c.b16 %v554, %v550
  %v895 = vpack.c.b16 %v555, %v551
  %v896 = vpack.c.b16 %v556, %v552
  %v897 = vpack.c.b16 %v557, %v553
  %v898 = vpack.c.b16 %v562, %v558
  %v899 = vpack.c.b16 %v563, %v559
  %v900 = vpack.c.b16 %v564, %v560
  %v901 = vpack.c.b16 %v565, %v561
  %v902 = vpack.c.b16 %v570, %v566
  %v903 = vpack.c.b16 %v571, %v567
  %v904 = vpack.c.b16 %v572, %v568
  %v905 = vpack.c.b16 %v573, %v569
  %v906 = vpack.c.b16 %v578, %v574
  %v907 = vpack.c.b16 %v579, %v575
  %v908 = vpack.c.b16 %v580, %v576
  %v909 = vpack.c.b16 %v581, %v577
  %v910 = vpack.c.b16 %v586, %v582
  %v911 = vpack.c.b16 %v587, %v583
  %v912 = vpack.c.b16 %v588, %v584
  %v913 = vpack.c.b16 %v589, %v585
  %v914 = vpack.c.b16 %v594, %v590
  %v915 = vpack.c.b16 %v595, %v591
  %v916 = vpack.c.b16 %v596, %v592
  %v917 = vpack.c.b16 %v597, %v593
  %v918 = vpack.c.b16 %v602, %v598
  %v919 = vpack.c.b16 %v603, %v599
  %v920 = vpack.c.b16 %v604, %v600
  %v921 = vpack.c.b16 %v605, %v601
  %v922 = vpack.c.b16 %v610, %v606
  %v923 = vpack.c.b16 %v611, %v607
  %v924 = vpack.c.b16 %v612, %v608
  %v925 = vpack.c.b16 %v613, %v609
  %v926 = vpack.c.b16 %v618, %v614
  %v927 = vpack.c.b16 %v619, %v615
  %v928 = vpack.c.b16 %v620, %v616
  %v929 = vpack.c.b16 %v621, %v617
  %v930 = vpack.c.b16 %v626, %v622
  %v931 = vpack.c.b16 %v627, %v623
  %v932 = vpack.c.b16 %v628, %v624
  %v933 = vpack.c.b16 %v629, %v625
  %v934 = vpack.c.b16 %v634, %v630
  %v935 = vpack.c.b16 %v635, %v631
  %v936 = vpack.c.b16 %v636, %v632
  %v937 = vpack.c.b16 %v637, %v633
  %v938 = vpack.c.b16 %v642, %v638
  %v939 = vpack.c.b16 %v643, %v639
  %v940 = vpack.c.b16 %v644, %v640
  %v941 = vpack.c.b16 %v645, %v641
  %v942 = vpack.c.b16 %v650, %v646
  %v943 = vpack.c.b16 %v651, %v647
  %v944 = vpack.c.b16 %v652, %v648
  %v945 = vpack.c.b16 %v653, %v649
  %v946 = vpack.c.b16 %v658, %v654
  %v947 = vpack.c.b16 %v659, %v655
  %v948 = vpack.c.b16 %v660, %v656
  %v949 = vpack.c.b16 %v661, %v657
  %v950 = vpack.c.b16 %v666, %v662
  %v951 = vpack.c.b16 %v667, %v663
  %v952 = vpack.c.b16 %v668, %v664
  %v953 = vpack.c.b16 %v669, %v665
  %v954 = vpack.c.b16 %v674, %v670
  %v955 = vpack.c.b16 %v675, %v671
  %v956 = vpack.c.b16 %v676, %v672
  %v957 = vpack.c.b16 %v677, %v673
  %v958 = vpack.c.b16 %v682, %v678
  %v959 = vpack.c.b16 %v683, %v679
  %v960 = vpack.c.b16 %v684, %v680
  %v961 = vpack.c.b16 %v685, %v681
  %v962 = vpack.c.b16 %v690, %v686
  %v963 = vpack.c.b16 %v691, %v687
  %v964 = vpack.c.b16 %v692, %v688
  %v965 = vpack.c.b16 %v693, %v689
  %v966 = vpack.c.b16 %v698, %v694
  %v967 = vpack.c.b16 %v699, %v695
  %v968 = vpack.c.b16 %v700, %v696
  %v969 = vpack.c.b16 %v701, %v697
  %v970 = vpack.c.b16 %v706, %v702
  %v971 = vpack.c.b16 %v707, %v703
  %v972 = vpack.c.b16 %v708, %v704
  %v973 = vpack.c.b16 %v709, %v705
  %v974 = vpack.c.b16 %v714, %v710
  %v975 = vpack.c.b16 %v715, %v711
  %v976 = vpack.c.b16 %v716, %v712
  %v977 = vpack.c.b16 %v717, %v713
  %v978 = vpack.c.b16 %v722, %v718
  %v979 = vpack.c.b16 %v723, %v719
  %v980 = vpack.c.b16 %v724, %v720
  %v981 = vpack.c.b16 %v725, %v721
  %v982 = vpack.c.b16 %v730, %v726
  %v983 = vpack.c.b16 %v731, %v727
  %v984 = vpack.c.b16 %v732, %v728
  %v985 = vpack.c.b16 %v733, %v729
  %v986 = vpack.c.b16 %v738, %v734
  %v987 = vpack.c.b16 %v739, %v735
  %v988 = vpack.c.b16 %v740, %v736
  %v989 = vpack.c.b16 %v741, %v737
  %v990 = vpack.c.b16 %v746, %v742
  %v991 = vpack.c.b16 %v747, %v743
  %v992 = vpack.c.b16 %v748, %v744
  %v993 = vpack.c.b16 %v749, %v745
  %v994 = vpack.c.b16 %v754, %v750
  %v995 = vpack.c.b16 %v755, %v751
  %v996 = vpack.c.b16 %v756, %v752
  %v997 = vpack.c.b16 %v757, %v753
  %v998 = vpack.c.b16 %v762, %v758
  %v999 = vpack.c.b16 %v763, %v759
  %v1000 = vpack.c.b16 %v764, %v760
  %v1001 = vpack.c.b16 %v765, %v761
  %v1002 = vpack.c.b16 %v770, %v766
  %v1003 = vpack.c.b16 %v771, %v767
  %v1004 = vpack.c.b16 %v772, %v768
  %v1005 = vpack.c.b16 %v773, %v769
  %v1006 = vpack.c.b16 %v778, %v774
  %v1007 = vpack.c.b16 %v779, %v775
  %v1008 = vpack.c.b16 %v780, %v776
  %v1009 = vpack.c.b16 %v781, %v777
  %v1010 = vpack.c.b16 %v786, %v782
  %v1011 = vpack.c.b16 %v787, %v783
  %v1012 = vpack.c.b16 %v788, %v784
  %v1013 = vpack.c.b16 %v789, %v785
  %v1014 = vpack.c.b16 %v794, %v790
  %v1015 = vpack.c.b16 %v795, %v791
  %v1016 = vpack.c.b16 %v796, %v792
  %v1017 = vpack.c.b16 %v797, %v793
  %v1018 = vpack.c.b16 %v802, %v798
  %v1019 = vpack.c.b16 %v803, %v799
  %v1020 = vpack.c.b16 %v804, %v800
  %v1021 = vpack.c.b16 %v805, %v801
  %v1022 = vpack.c.b16 %v810, %v806
  %v1023 = vpack.c.b16 %v811, %v807
  %v1024 = vpack.c.b16 %v812, %v808
  %v1025 = vpack.c.b16 %v813, %v809
  %v1026 = vpack.c.b16 %v818, %v814
  %v1027 = vpack.c.b16 %v819, %v815
  %v1028 = vpack.c.b16 %v820, %v816
  %v1029 = vpack.c.b16 %v821, %v817
  %v1030 = vpack.c.b16 %v826, %v822
  %v1031 = vpack.c.b16 %v827, %v823
  %v1032 = vpack.c.b16 %v828, %v824
  %v1033 = vpack.c.b16 %v829, %v825
  %v1034 = vpack.c.b16 %v834, %v830
  %v1035 = vpack.c.b16 %v835, %v831
  %v1036 = vpack.c.b16 %v836, %v832
  %v1037 = vpack.c.b16 %v837, %v833
  %v1038 = vpack.c.b16 %v842, %v838
  %v1039 = vpack.c.b16 %v843, %v839
  %v1040 = vpack.c.b16 %v844, %v840
  %v1041 = vpack.c.b16 %v845, %v841
  %vm1238 = vcmask 130048
  %v1240 = vsel %vm1238, %v51, 0
  %1242 = vmatpush.bf16.msra.mxu0 %v874
  %1243 = vmatpush.bf16.msra.mxu0 %v870
  %1244 = vmatpush.bf16.msra.mxu0 %v866
  %1245 = vmatpush.bf16.msra.mxu0 %v862
  %1246 = vmatpush.bf16.msra.mxu0 %v858
  %1247 = vmatpush.bf16.msra.mxu0 %v854
  %1248 = vmatpush.bf16.msra.mxu0 %v850
  %1249 = vmatpush.bf16.msra.mxu0 %v846
  %1250 = vmatmul.bf16.gmra.mxu0 %v45
  %v1251 = vpop.f32.mrf.mxu0
  %v1252 = vadd.f32 %v250, %v1251
  %v1253 = vpop.f32.mrf.mxu0
  %1254 = vdwg.mxu0
  %1255 = vmatpush.bf16.msra.mxu0 %v906
  %1256 = vmatpush.bf16.msra.mxu0 %v902
  %1257 = vmatpush.bf16.msra.mxu0 %v898
  %1258 = vmatpush.bf16.msra.mxu0 %v894
  %1259 = vmatpush.bf16.msra.mxu0 %v890
  %1260 = vmatpush.bf16.msra.mxu0 %v886
  %1261 = vmatpush.bf16.msra.mxu0 %v882
  %1262 = vmatpush.bf16.msra.mxu0 %v878
  %1263 = vmatmul.bf16.gmra.mxu0 %v46
  %v1264 = vpop.f32.mrf.mxu0
  %v1265 = vadd.f32 %v1252, %v1264
  %v1266 = vpop.f32.mrf.mxu0
  %1267 = vdwg.mxu0
  %1268 = vmatpush.bf16.msra.mxu0 %v938
  %1269 = vmatpush.bf16.msra.mxu0 %v934
  %1270 = vmatpush.bf16.msra.mxu0 %v930
  %1271 = vmatpush.bf16.msra.mxu0 %v926
  %1272 = vmatpush.bf16.msra.mxu0 %v922
  %1273 = vmatpush.bf16.msra.mxu0 %v918
  %1274 = vmatpush.bf16.msra.mxu0 %v914
  %1275 = vmatpush.bf16.msra.mxu0 %v910
  %1276 = vmatmul.bf16.gmra.mxu0 %v47
  %v1277 = vpop.f32.mrf.mxu0
  %v1278 = vadd.f32 %v1265, %v1277
  %v1279 = vpop.f32.mrf.mxu0
  %1280 = vdwg.mxu0
  %1281 = vmatpush.bf16.msra.mxu0 %v970
  %1282 = vmatpush.bf16.msra.mxu0 %v966
  %1283 = vmatpush.bf16.msra.mxu0 %v962
  %1284 = vmatpush.bf16.msra.mxu0 %v958
  %1285 = vmatpush.bf16.msra.mxu0 %v954
  %1286 = vmatpush.bf16.msra.mxu0 %v950
  %1287 = vmatpush.bf16.msra.mxu0 %v946
  %1288 = vmatpush.bf16.msra.mxu0 %v942
  %1289 = vmatmul.bf16.gmra.mxu0 %v48
  %v1290 = vpop.f32.mrf.mxu0
  %v1291 = vadd.f32 %v1278, %v1290
  %v1292 = vpop.f32.mrf.mxu0
  %1293 = vdwg.mxu0
  %1294 = vmatpush.bf16.msra.mxu0 %v1002
  %1295 = vmatpush.bf16.msra.mxu0 %v998
  %1296 = vmatpush.bf16.msra.mxu0 %v994
  %1297 = vmatpush.bf16.msra.mxu0 %v990
  %1298 = vmatpush.bf16.msra.mxu0 %v986
  %1299 = vmatpush.bf16.msra.mxu0 %v982
  %1300 = vmatpush.bf16.msra.mxu0 %v978
  %1301 = vmatpush.bf16.msra.mxu0 %v974
  %1302 = vmatmul.bf16.gmra.mxu0 %v49
  %v1303 = vpop.f32.mrf.mxu0
  %v1304 = vadd.f32 %v1291, %v1303
  %v1305 = vpop.f32.mrf.mxu0
  %1306 = vdwg.mxu0
  %1307 = vmatpush.bf16.msra.mxu0 %v1034
  %1308 = vmatpush.bf16.msra.mxu0 %v1030
  %1309 = vmatpush.bf16.msra.mxu0 %v1026
  %1310 = vmatpush.bf16.msra.mxu0 %v1022
  %1311 = vmatpush.bf16.msra.mxu0 %v1018
  %1312 = vmatpush.bf16.msra.mxu0 %v1014
  %1313 = vmatpush.bf16.msra.mxu0 %v1010
  %1314 = vmatpush.bf16.msra.mxu0 %v1006
  %1315 = vmatmul.bf16.gmra.mxu0 %v50
  %v1316 = vpop.f32.mrf.mxu0
  %v1317 = vadd.f32 %v1304, %v1316
  %v1318 = vpop.f32.mrf.mxu0
  %1319 = vdwg.mxu0
  %1320 = vmatpush.bf16.msra.mxu0 0
  %1321 = vmatpush.bf16.msra.mxu0 0
  %1322 = vmatpush.bf16.msra.mxu0 0
  %1323 = vmatpush.bf16.msra.mxu0 0
  %1324 = vmatpush.bf16.msra.mxu0 0
  %1325 = vmatpush.bf16.msra.mxu0 0
  %1326 = vmatpush.bf16.msra.mxu0 0
  %1327 = vmatpush.bf16.msra.mxu0 %v1038
  %1328 = vmatmul.bf16.gmra.mxu0 %v1240
  %v1329 = vpop.f32.mrf.mxu0
  %v1330 = vadd.f32 %v1317, %v1329
  %v1331 = vpop.f32.mrf.mxu0
  %1332 = vdwg.mxu0
  %1333 = vmatpush.bf16.msra.mxu0 %v875
  %1334 = vmatpush.bf16.msra.mxu0 %v871
  %1335 = vmatpush.bf16.msra.mxu0 %v867
  %1336 = vmatpush.bf16.msra.mxu0 %v863
  %1337 = vmatpush.bf16.msra.mxu0 %v859
  %1338 = vmatpush.bf16.msra.mxu0 %v855
  %1339 = vmatpush.bf16.msra.mxu0 %v851
  %1340 = vmatpush.bf16.msra.mxu0 %v847
  %1341 = vmatmul.bf16.gmra.mxu0 %v45
  %v1342 = vpop.f32.mrf.mxu0
  %v1343 = vadd.f32 %v251, %v1342
  %v1344 = vpop.f32.mrf.mxu0
  %1345 = vdwg.mxu0
  %1346 = vmatpush.bf16.msra.mxu0 %v907
  %1347 = vmatpush.bf16.msra.mxu0 %v903
  %1348 = vmatpush.bf16.msra.mxu0 %v899
  %1349 = vmatpush.bf16.msra.mxu0 %v895
  %1350 = vmatpush.bf16.msra.mxu0 %v891
  %1351 = vmatpush.bf16.msra.mxu0 %v887
  %1352 = vmatpush.bf16.msra.mxu0 %v883
  %1353 = vmatpush.bf16.msra.mxu0 %v879
  %1354 = vmatmul.bf16.gmra.mxu0 %v46
  %v1355 = vpop.f32.mrf.mxu0
  %v1356 = vadd.f32 %v1343, %v1355
  %v1357 = vpop.f32.mrf.mxu0
  %1358 = vdwg.mxu0
  %1359 = vmatpush.bf16.msra.mxu0 %v939
  %1360 = vmatpush.bf16.msra.mxu0 %v935
  %1361 = vmatpush.bf16.msra.mxu0 %v931
  %1362 = vmatpush.bf16.msra.mxu0 %v927
  %1363 = vmatpush.bf16.msra.mxu0 %v923
  %1364 = vmatpush.bf16.msra.mxu0 %v919
  %1365 = vmatpush.bf16.msra.mxu0 %v915
  %1366 = vmatpush.bf16.msra.mxu0 %v911
  %1367 = vmatmul.bf16.gmra.mxu0 %v47
  %v1368 = vpop.f32.mrf.mxu0
  %v1369 = vadd.f32 %v1356, %v1368
  %v1370 = vpop.f32.mrf.mxu0
  %1371 = vdwg.mxu0
  %1372 = vmatpush.bf16.msra.mxu0 %v971
  %1373 = vmatpush.bf16.msra.mxu0 %v967
  %1374 = vmatpush.bf16.msra.mxu0 %v963
  %1375 = vmatpush.bf16.msra.mxu0 %v959
  %1376 = vmatpush.bf16.msra.mxu0 %v955
  %1377 = vmatpush.bf16.msra.mxu0 %v951
  %1378 = vmatpush.bf16.msra.mxu0 %v947
  %1379 = vmatpush.bf16.msra.mxu0 %v943
  %1380 = vmatmul.bf16.gmra.mxu0 %v48
  %v1381 = vpop.f32.mrf.mxu0
  %v1382 = vadd.f32 %v1369, %v1381
  %v1383 = vpop.f32.mrf.mxu0
  %1384 = vdwg.mxu0
  %1385 = vmatpush.bf16.msra.mxu0 %v1003
  %1386 = vmatpush.bf16.msra.mxu0 %v999
  %1387 = vmatpush.bf16.msra.mxu0 %v995
  %1388 = vmatpush.bf16.msra.mxu0 %v991
  %1389 = vmatpush.bf16.msra.mxu0 %v987
  %1390 = vmatpush.bf16.msra.mxu0 %v983
  %1391 = vmatpush.bf16.msra.mxu0 %v979
  %1392 = vmatpush.bf16.msra.mxu0 %v975
  %1393 = vmatmul.bf16.gmra.mxu0 %v49
  %v1394 = vpop.f32.mrf.mxu0
  %v1395 = vadd.f32 %v1382, %v1394
  %v1396 = vpop.f32.mrf.mxu0
  %1397 = vdwg.mxu0
  %1398 = vmatpush.bf16.msra.mxu0 %v1035
  %1399 = vmatpush.bf16.msra.mxu0 %v1031
  %1400 = vmatpush.bf16.msra.mxu0 %v1027
  %1401 = vmatpush.bf16.msra.mxu0 %v1023
  %1402 = vmatpush.bf16.msra.mxu0 %v1019
  %1403 = vmatpush.bf16.msra.mxu0 %v1015
  %1404 = vmatpush.bf16.msra.mxu0 %v1011
  %1405 = vmatpush.bf16.msra.mxu0 %v1007
  %1406 = vmatmul.bf16.gmra.mxu0 %v50
  %v1407 = vpop.f32.mrf.mxu0
  %v1408 = vadd.f32 %v1395, %v1407
  %v1409 = vpop.f32.mrf.mxu0
  %1410 = vdwg.mxu0
  %1411 = vmatpush.bf16.msra.mxu0 0
  %1412 = vmatpush.bf16.msra.mxu0 0
  %1413 = vmatpush.bf16.msra.mxu0 0
  %1414 = vmatpush.bf16.msra.mxu0 0
  %1415 = vmatpush.bf16.msra.mxu0 0
  %1416 = vmatpush.bf16.msra.mxu0 0
  %1417 = vmatpush.bf16.msra.mxu0 0
  %1418 = vmatpush.bf16.msra.mxu0 %v1039
  %1419 = vmatmul.bf16.gmra.mxu0 %v1240
  %v1420 = vpop.f32.mrf.mxu0
  %v1421 = vadd.f32 %v1408, %v1420
  %v1422 = vpop.f32.mrf.mxu0
  %1423 = vdwg.mxu0
  %1424 = vmatpush.bf16.msra.mxu0 %v876
  %1425 = vmatpush.bf16.msra.mxu0 %v872
  %1426 = vmatpush.bf16.msra.mxu0 %v868
  %1427 = vmatpush.bf16.msra.mxu0 %v864
  %1428 = vmatpush.bf16.msra.mxu0 %v860
  %1429 = vmatpush.bf16.msra.mxu0 %v856
  %1430 = vmatpush.bf16.msra.mxu0 %v852
  %1431 = vmatpush.bf16.msra.mxu0 %v848
  %1432 = vmatmul.bf16.gmra.mxu0 %v45
  %v1433 = vpop.f32.mrf.mxu0
  %v1434 = vadd.f32 %v252, %v1433
  %v1435 = vpop.f32.mrf.mxu0
  %1436 = vdwg.mxu0
  %1437 = vmatpush.bf16.msra.mxu0 %v908
  %1438 = vmatpush.bf16.msra.mxu0 %v904
  %1439 = vmatpush.bf16.msra.mxu0 %v900
  %1440 = vmatpush.bf16.msra.mxu0 %v896
  %1441 = vmatpush.bf16.msra.mxu0 %v892
  %1442 = vmatpush.bf16.msra.mxu0 %v888
  %1443 = vmatpush.bf16.msra.mxu0 %v884
  %1444 = vmatpush.bf16.msra.mxu0 %v880
  %1445 = vmatmul.bf16.gmra.mxu0 %v46
  %v1446 = vpop.f32.mrf.mxu0
  %v1447 = vadd.f32 %v1434, %v1446
  %v1448 = vpop.f32.mrf.mxu0
  %1449 = vdwg.mxu0
  %1450 = vmatpush.bf16.msra.mxu0 %v940
  %1451 = vmatpush.bf16.msra.mxu0 %v936
  %1452 = vmatpush.bf16.msra.mxu0 %v932
  %1453 = vmatpush.bf16.msra.mxu0 %v928
  %1454 = vmatpush.bf16.msra.mxu0 %v924
  %1455 = vmatpush.bf16.msra.mxu0 %v920
  %1456 = vmatpush.bf16.msra.mxu0 %v916
  %1457 = vmatpush.bf16.msra.mxu0 %v912
  %1458 = vmatmul.bf16.gmra.mxu0 %v47
  %v1459 = vpop.f32.mrf.mxu0
  %v1460 = vadd.f32 %v1447, %v1459
  %v1461 = vpop.f32.mrf.mxu0
  %1462 = vdwg.mxu0
  %1463 = vmatpush.bf16.msra.mxu0 %v972
  %1464 = vmatpush.bf16.msra.mxu0 %v968
  %1465 = vmatpush.bf16.msra.mxu0 %v964
  %1466 = vmatpush.bf16.msra.mxu0 %v960
  %1467 = vmatpush.bf16.msra.mxu0 %v956
  %1468 = vmatpush.bf16.msra.mxu0 %v952
  %1469 = vmatpush.bf16.msra.mxu0 %v948
  %1470 = vmatpush.bf16.msra.mxu0 %v944
  %1471 = vmatmul.bf16.gmra.mxu0 %v48
  %v1472 = vpop.f32.mrf.mxu0
  %v1473 = vadd.f32 %v1460, %v1472
  %v1474 = vpop.f32.mrf.mxu0
  %1475 = vdwg.mxu0
  %1476 = vmatpush.bf16.msra.mxu0 %v1004
  %1477 = vmatpush.bf16.msra.mxu0 %v1000
  %1478 = vmatpush.bf16.msra.mxu0 %v996
  %1479 = vmatpush.bf16.msra.mxu0 %v992
  %1480 = vmatpush.bf16.msra.mxu0 %v988
  %1481 = vmatpush.bf16.msra.mxu0 %v984
  %1482 = vmatpush.bf16.msra.mxu0 %v980
  %1483 = vmatpush.bf16.msra.mxu0 %v976
  %1484 = vmatmul.bf16.gmra.mxu0 %v49
  %v1485 = vpop.f32.mrf.mxu0
  %v1486 = vadd.f32 %v1473, %v1485
  %v1487 = vpop.f32.mrf.mxu0
  %1488 = vdwg.mxu0
  %1489 = vmatpush.bf16.msra.mxu0 %v1036
  %1490 = vmatpush.bf16.msra.mxu0 %v1032
  %1491 = vmatpush.bf16.msra.mxu0 %v1028
  %1492 = vmatpush.bf16.msra.mxu0 %v1024
  %1493 = vmatpush.bf16.msra.mxu0 %v1020
  %1494 = vmatpush.bf16.msra.mxu0 %v1016
  %1495 = vmatpush.bf16.msra.mxu0 %v1012
  %1496 = vmatpush.bf16.msra.mxu0 %v1008
  %1497 = vmatmul.bf16.gmra.mxu0 %v50
  %v1498 = vpop.f32.mrf.mxu0
  %v1499 = vadd.f32 %v1486, %v1498
  %v1500 = vpop.f32.mrf.mxu0
  %1501 = vdwg.mxu0
  %1502 = vmatpush.bf16.msra.mxu0 0
  %1503 = vmatpush.bf16.msra.mxu0 0
  %1504 = vmatpush.bf16.msra.mxu0 0
  %1505 = vmatpush.bf16.msra.mxu0 0
  %1506 = vmatpush.bf16.msra.mxu0 0
  %1507 = vmatpush.bf16.msra.mxu0 0
  %1508 = vmatpush.bf16.msra.mxu0 0
  %1509 = vmatpush.bf16.msra.mxu0 %v1040
  %1510 = vmatmul.bf16.gmra.mxu0 %v1240
  %v1511 = vpop.f32.mrf.mxu0
  %v1512 = vadd.f32 %v1499, %v1511
  %v1513 = vpop.f32.mrf.mxu0
  %1514 = vdwg.mxu0
  %1515 = vmatpush.bf16.msra.mxu0 %v877
  %1516 = vmatpush.bf16.msra.mxu0 %v873
  %1517 = vmatpush.bf16.msra.mxu0 %v869
  %1518 = vmatpush.bf16.msra.mxu0 %v865
  %1519 = vmatpush.bf16.msra.mxu0 %v861
  %1520 = vmatpush.bf16.msra.mxu0 %v857
  %1521 = vmatpush.bf16.msra.mxu0 %v853
  %1522 = vmatpush.bf16.msra.mxu0 %v849
  %1523 = vmatmul.bf16.gmra.mxu0 %v45
  %v1524 = vpop.f32.mrf.mxu0
  %v1525 = vadd.f32 %v253, %v1524
  %v1526 = vpop.f32.mrf.mxu0
  %1527 = vdwg.mxu0
  %1528 = vmatpush.bf16.msra.mxu0 %v909
  %1529 = vmatpush.bf16.msra.mxu0 %v905
  %1530 = vmatpush.bf16.msra.mxu0 %v901
  %1531 = vmatpush.bf16.msra.mxu0 %v897
  %1532 = vmatpush.bf16.msra.mxu0 %v893
  %1533 = vmatpush.bf16.msra.mxu0 %v889
  %1534 = vmatpush.bf16.msra.mxu0 %v885
  %1535 = vmatpush.bf16.msra.mxu0 %v881
  %1536 = vmatmul.bf16.gmra.mxu0 %v46
  %v1537 = vpop.f32.mrf.mxu0
  %v1538 = vadd.f32 %v1525, %v1537
  %v1539 = vpop.f32.mrf.mxu0
  %1540 = vdwg.mxu0
  %1541 = vmatpush.bf16.msra.mxu0 %v941
  %1542 = vmatpush.bf16.msra.mxu0 %v937
  %1543 = vmatpush.bf16.msra.mxu0 %v933
  %1544 = vmatpush.bf16.msra.mxu0 %v929
  %1545 = vmatpush.bf16.msra.mxu0 %v925
  %1546 = vmatpush.bf16.msra.mxu0 %v921
  %1547 = vmatpush.bf16.msra.mxu0 %v917
  %1548 = vmatpush.bf16.msra.mxu0 %v913
  %1549 = vmatmul.bf16.gmra.mxu0 %v47
  %v1550 = vpop.f32.mrf.mxu0
  %v1551 = vadd.f32 %v1538, %v1550
  %v1552 = vpop.f32.mrf.mxu0
  %1553 = vdwg.mxu0
  %1554 = vmatpush.bf16.msra.mxu0 %v973
  %1555 = vmatpush.bf16.msra.mxu0 %v969
  %1556 = vmatpush.bf16.msra.mxu0 %v965
  %1557 = vmatpush.bf16.msra.mxu0 %v961
  %1558 = vmatpush.bf16.msra.mxu0 %v957
  %1559 = vmatpush.bf16.msra.mxu0 %v953
  %1560 = vmatpush.bf16.msra.mxu0 %v949
  %1561 = vmatpush.bf16.msra.mxu0 %v945
  %1562 = vmatmul.bf16.gmra.mxu0 %v48
  %v1563 = vpop.f32.mrf.mxu0
  %v1564 = vadd.f32 %v1551, %v1563
  %v1565 = vpop.f32.mrf.mxu0
  %1566 = vdwg.mxu0
  %1567 = vmatpush.bf16.msra.mxu0 %v1005
  %1568 = vmatpush.bf16.msra.mxu0 %v1001
  %1569 = vmatpush.bf16.msra.mxu0 %v997
  %1570 = vmatpush.bf16.msra.mxu0 %v993
  %1571 = vmatpush.bf16.msra.mxu0 %v989
  %1572 = vmatpush.bf16.msra.mxu0 %v985
  %1573 = vmatpush.bf16.msra.mxu0 %v981
  %1574 = vmatpush.bf16.msra.mxu0 %v977
  %1575 = vmatmul.bf16.gmra.mxu0 %v49
  %v1576 = vpop.f32.mrf.mxu0
  %v1577 = vadd.f32 %v1564, %v1576
  %v1578 = vpop.f32.mrf.mxu0
  %1579 = vdwg.mxu0
  %1580 = vmatpush.bf16.msra.mxu0 %v1037
  %1581 = vmatpush.bf16.msra.mxu0 %v1033
  %1582 = vmatpush.bf16.msra.mxu0 %v1029
  %1583 = vmatpush.bf16.msra.mxu0 %v1025
  %1584 = vmatpush.bf16.msra.mxu0 %v1021
  %1585 = vmatpush.bf16.msra.mxu0 %v1017
  %1586 = vmatpush.bf16.msra.mxu0 %v1013
  %1587 = vmatpush.bf16.msra.mxu0 %v1009
  %1588 = vmatmul.bf16.gmra.mxu0 %v50
  %v1589 = vpop.f32.mrf.mxu0
  %v1590 = vadd.f32 %v1577, %v1589
  %v1591 = vpop.f32.mrf.mxu0
  %1592 = vdwg.mxu0
  %1593 = vmatpush.bf16.msra.mxu0 0
  %1594 = vmatpush.bf16.msra.mxu0 0
  %1595 = vmatpush.bf16.msra.mxu0 0
  %1596 = vmatpush.bf16.msra.mxu0 0
  %1597 = vmatpush.bf16.msra.mxu0 0
  %1598 = vmatpush.bf16.msra.mxu0 0
  %1599 = vmatpush.bf16.msra.mxu0 0
  %1600 = vmatpush.bf16.msra.mxu0 %v1041
  %1601 = vmatmul.bf16.gmra.mxu0 %v1240
  %v1602 = vpop.f32.mrf.mxu0
  %v1603 = vadd.f32 %v1590, %v1602
  %v1604 = vpop.f32.mrf.mxu0
  %1605 = vdwg.mxu0
  %v1606 = vmax.f32 %v1330, 0.0
  %v1607 = vmax.f32 %v1421, 0.0
  %v1608 = vmax.f32 %v1512, 0.0
  %v1609 = vmax.f32 %v1603, 0.0
  %v1610 = vpack.c.bf16 %v1606, %v1606
  %v1611 = vpack.c.bf16 %v1607, %v1607
  %v1612 = vpack.c.bf16 %v1608, %v1608
  %v1613 = vpack.c.bf16 %v1609, %v1609
  %v1614 = vld [vmem:[%s4] sm:$0xf]
  %v1615 = vld [vmem:[%s4 + $0x4] sm:$0xf]
  %v1616 = vld [vmem:[%s4 + $0x8] sm:$0xf]
  %v1617 = vld [vmem:[%s4 + $0xc] sm:$0xf]
  %v1618 = vld [vmem:[%s4 + $0x10] sm:$0xf]
  %v1619 = vld [vmem:[%s4 + $0x14] sm:$0xf]
  %v1620 = vld [vmem:[%s4 + $0x18] sm:$0xf]
  %v1621 = vld [vmem:[%s4 + $0x1c] sm:$0xf]
  %v1622 = vld [vmem:[%s4 + $0x20] sm:$0xf]
  %v1623 = vld [vmem:[%s4 + $0x24] sm:$0xf]
  %v1624 = vld [vmem:[%s4 + $0x28] sm:$0xf]
  %v1625 = vld [vmem:[%s4 + $0x2c] sm:$0xf]
  %v1626 = vld [vmem:[%s4 + $0x30] sm:$0xf]
  %v1627 = vld [vmem:[%s4 + $0x34] sm:$0xf]
  %v1628 = vld [vmem:[%s4 + $0x38] sm:$0xf]
  %v1629 = vld [vmem:[%s4 + $0x3c] sm:$0xf]
  %v1630 = vld [vmem:[%s4 + $0x40] sm:$0xf]
  %v1631 = vld [vmem:[%s4 + $0x44] sm:$0xf]
  %v1632 = vld [vmem:[%s4 + $0x48] sm:$0xf]
  %v1633 = vld [vmem:[%s4 + $0x4c] sm:$0xf]
  %v1634 = vld [vmem:[%s4 + $0x50] sm:$0xf]
  %v1635 = vld [vmem:[%s4 + $0x54] sm:$0xf]
  %v1636 = vld [vmem:[%s4 + $0x58] sm:$0xf]
  %v1637 = vld [vmem:[%s4 + $0x5c] sm:$0xf]
  %v1638 = vld [vmem:[%s4 + $0x60] sm:$0xf]
  %v1639 = vld [vmem:[%s4 + $0x64] sm:$0xf]
  %v1640 = vld [vmem:[%s4 + $0x68] sm:$0xf]
  %v1641 = vld [vmem:[%s4 + $0x6c] sm:$0xf]
  %v1642 = vld [vmem:[%s4 + $0x70] sm:$0xf]
  %v1643 = vld [vmem:[%s4 + $0x74] sm:$0xf]
  %v1644 = vld [vmem:[%s4 + $0x78] sm:$0xf]
  %v1645 = vld [vmem:[%s4 + $0x7c] sm:$0xf]
  %v1646 = vld [vmem:[%s4 + $0x80] sm:$0xf]
  %v1647 = vld [vmem:[%s4 + $0x84] sm:$0xf]
  %v1648 = vld [vmem:[%s4 + $0x88] sm:$0xf]
  %v1649 = vld [vmem:[%s4 + $0x8c] sm:$0xf]
  %v1650 = vld [vmem:[%s4 + $0x90] sm:$0xf]
  %v1651 = vld [vmem:[%s4 + $0x94] sm:$0xf]
  %v1652 = vld [vmem:[%s4 + $0x98] sm:$0xf]
  %v1653 = vld [vmem:[%s4 + $0x9c] sm:$0xf]
  %v1654 = vld [vmem:[%s4 + $0xa0] sm:$0xf]
  %v1655 = vld [vmem:[%s4 + $0xa4] sm:$0xf]
  %v1656 = vld [vmem:[%s4 + $0xa8] sm:$0xf]
  %v1657 = vld [vmem:[%s4 + $0xac] sm:$0xf]
  %v1658 = vld [vmem:[%s4 + $0xb0] sm:$0xf]
  %v1659 = vld [vmem:[%s4 + $0xb4] sm:$0xf]
  %v1660 = vld [vmem:[%s4 + $0xb8] sm:$0xf]
  %v1661 = vld [vmem:[%s4 + $0xbc] sm:$0xf]
  %v1662 = vld [vmem:[%s4 + $0xc0] sm:$0xf]
  %v1663 = vld [vmem:[%s5] sm:$0x1]
  %v1665 = vperm.slane %v1663, 0
  %v1716 = vunpack.c.l.b16 %v1614
  %v1717 = vunpack.c.l.b16 %v1615
  %v1718 = vunpack.c.l.b16 %v1616
  %v1719 = vunpack.c.l.b16 %v1617
  %v1720 = vunpack.c.l.b16 %v1618
  %v1721 = vunpack.c.l.b16 %v1619
  %v1722 = vunpack.c.l.b16 %v1620
  %v1723 = vunpack.c.l.b16 %v1621
  %v1724 = vunpack.c.l.b16 %v1622
  %v1725 = vunpack.c.l.b16 %v1623
  %v1726 = vunpack.c.l.b16 %v1624
  %v1727 = vunpack.c.l.b16 %v1625
  %v1728 = vunpack.c.l.b16 %v1626
  %v1729 = vunpack.c.l.b16 %v1627
  %v1730 = vunpack.c.l.b16 %v1628
  %v1731 = vunpack.c.l.b16 %v1629
  %v1732 = vunpack.c.l.b16 %v1630
  %v1733 = vunpack.c.l.b16 %v1631
  %v1734 = vunpack.c.l.b16 %v1632
  %v1735 = vunpack.c.l.b16 %v1633
  %v1736 = vunpack.c.l.b16 %v1634
  %v1737 = vunpack.c.l.b16 %v1635
  %v1738 = vunpack.c.l.b16 %v1636
  %v1739 = vunpack.c.l.b16 %v1637
  %v1740 = vunpack.c.l.b16 %v1638
  %v1741 = vunpack.c.l.b16 %v1639
  %v1742 = vunpack.c.l.b16 %v1640
  %v1743 = vunpack.c.l.b16 %v1641
  %v1744 = vunpack.c.l.b16 %v1642
  %v1745 = vunpack.c.l.b16 %v1643
  %v1746 = vunpack.c.l.b16 %v1644
  %v1747 = vunpack.c.l.b16 %v1645
  %v1748 = vunpack.c.l.b16 %v1646
  %v1749 = vunpack.c.l.b16 %v1647
  %v1750 = vunpack.c.l.b16 %v1648
  %v1751 = vunpack.c.l.b16 %v1649
  %v1752 = vunpack.c.l.b16 %v1650
  %v1753 = vunpack.c.l.b16 %v1651
  %v1754 = vunpack.c.l.b16 %v1652
  %v1755 = vunpack.c.l.b16 %v1653
  %v1756 = vunpack.c.l.b16 %v1654
  %v1757 = vunpack.c.l.b16 %v1655
  %v1758 = vunpack.c.l.b16 %v1656
  %v1759 = vunpack.c.l.b16 %v1657
  %v1760 = vunpack.c.l.b16 %v1658
  %v1761 = vunpack.c.l.b16 %v1659
  %v1762 = vunpack.c.l.b16 %v1660
  %v1763 = vunpack.c.l.b16 %v1661
  %v1764 = vunpack.c.l.b16 %v1662
  %v1765 = vpack.c.b16 %v1717, %v1716
  %v1766 = vpack.c.b16 %v1719, %v1718
  %v1767 = vpack.c.b16 %v1721, %v1720
  %v1768 = vpack.c.b16 %v1723, %v1722
  %v1769 = vpack.c.b16 %v1725, %v1724
  %v1770 = vpack.c.b16 %v1727, %v1726
  %v1771 = vpack.c.b16 %v1729, %v1728
  %v1772 = vpack.c.b16 %v1731, %v1730
  %v1773 = vpack.c.b16 %v1733, %v1732
  %v1774 = vpack.c.b16 %v1735, %v1734
  %v1775 = vpack.c.b16 %v1737, %v1736
  %v1776 = vpack.c.b16 %v1739, %v1738
  %v1777 = vpack.c.b16 %v1741, %v1740
  %v1778 = vpack.c.b16 %v1743, %v1742
  %v1779 = vpack.c.b16 %v1745, %v1744
  %v1780 = vpack.c.b16 %v1747, %v1746
  %v1781 = vpack.c.b16 %v1749, %v1748
  %v1782 = vpack.c.b16 %v1751, %v1750
  %v1783 = vpack.c.b16 %v1753, %v1752
  %v1784 = vpack.c.b16 %v1755, %v1754
  %v1785 = vpack.c.b16 %v1757, %v1756
  %v1786 = vpack.c.b16 %v1759, %v1758
  %v1787 = vpack.c.b16 %v1761, %v1760
  %v1788 = vpack.c.b16 %v1763, %v1762
  %v1789 = vpack.c.b16 %v1764, %v1764
  %vm1814 = vcmask 64512
  %v1816 = vsel %vm1814, %v1613, 0
  %vm1818 = vcmask 1043456
  %v1820 = vsel %vm1818, %v1789, 0
  %1822 = vmatpush.bf16.msra.mxu0 %v1772
  %1823 = vmatpush.bf16.msra.mxu0 %v1771
  %1824 = vmatpush.bf16.msra.mxu0 %v1770
  %1825 = vmatpush.bf16.msra.mxu0 %v1769
  %1826 = vmatpush.bf16.msra.mxu0 %v1768
  %1827 = vmatpush.bf16.msra.mxu0 %v1767
  %1828 = vmatpush.bf16.msra.mxu0 %v1766
  %1829 = vmatpush.bf16.msra.mxu0 %v1765
  %1830 = vmatmul.bf16.gmra.mxu0 %v1610
  %v1831 = vpop.f32.mrf.mxu0
  %v1832 = vadd.f32 %v1665, %v1831
  %v1833 = vpop.f32.mrf.mxu0
  %1834 = vdwg.mxu0
  %1835 = vmatpush.bf16.msra.mxu0 %v1780
  %1836 = vmatpush.bf16.msra.mxu0 %v1779
  %1837 = vmatpush.bf16.msra.mxu0 %v1778
  %1838 = vmatpush.bf16.msra.mxu0 %v1777
  %1839 = vmatpush.bf16.msra.mxu0 %v1776
  %1840 = vmatpush.bf16.msra.mxu0 %v1775
  %1841 = vmatpush.bf16.msra.mxu0 %v1774
  %1842 = vmatpush.bf16.msra.mxu0 %v1773
  %1843 = vmatmul.bf16.gmra.mxu0 %v1611
  %v1844 = vpop.f32.mrf.mxu0
  %v1845 = vadd.f32 %v1832, %v1844
  %v1846 = vpop.f32.mrf.mxu0
  %1847 = vdwg.mxu0
  %1848 = vmatpush.bf16.msra.mxu0 %v1788
  %1849 = vmatpush.bf16.msra.mxu0 %v1787
  %1850 = vmatpush.bf16.msra.mxu0 %v1786
  %1851 = vmatpush.bf16.msra.mxu0 %v1785
  %1852 = vmatpush.bf16.msra.mxu0 %v1784
  %1853 = vmatpush.bf16.msra.mxu0 %v1783
  %1854 = vmatpush.bf16.msra.mxu0 %v1782
  %1855 = vmatpush.bf16.msra.mxu0 %v1781
  %1856 = vmatmul.bf16.gmra.mxu0 %v1612
  %v1857 = vpop.f32.mrf.mxu0
  %v1858 = vadd.f32 %v1845, %v1857
  %v1859 = vpop.f32.mrf.mxu0
  %1860 = vdwg.mxu0
  %1861 = vmatpush.bf16.msra.mxu0 0
  %1862 = vmatpush.bf16.msra.mxu0 0
  %1863 = vmatpush.bf16.msra.mxu0 0
  %1864 = vmatpush.bf16.msra.mxu0 0
  %1865 = vmatpush.bf16.msra.mxu0 0
  %1866 = vmatpush.bf16.msra.mxu0 0
  %1867 = vmatpush.bf16.msra.mxu0 0
  %1868 = vmatpush.bf16.msra.mxu0 %v1820
  %1869 = vmatmul.bf16.gmra.mxu0 %v1816
  %v1870 = vpop.f32.mrf.mxu0
  %v1871 = vadd.f32 %v1858, %v1870
  %v1872 = vpop.f32.mrf.mxu0
  %1873 = vdwg.mxu0
  %1874 = vst [vmem:[%s11] sm:$0xff] %v1871
  %v1875 = vld [vmem:[%s1] sm:$0xff]
  %v1876 = vmul.f32 %v1871, 0.5
  %v1877 = vmul.f32 %v1876, 1.442695
  %v1878 = vpow.pop %v1877
  %1880 = vrot.lane.b32.xlu0 %v1878, 112
  %v1881 = vpop.permute.xlu0 %1880
  %v1883 = vmul.f32 %v1875, %v1881
  %v1884 = vadd.f32 %v1871, %v1883
  %v1885 = vpack.c.bf16 %v1884, %v1884
  %v1886 = vld [vmem:[%s6] sm:$0xff]
  %v1887 = vld [vmem:[%s6 + $0x8] sm:$0xff]
  %v1888 = vld [vmem:[%s6 + $0x10] sm:$0xff]
  %v1889 = vld [vmem:[%s6 + $0x18] sm:$0xff]
  %v1890 = vld [vmem:[%s7] sm:$0xf]
  %v1892 = vperm.slane %v1890, 0
  %v1893 = vperm.slane %v1890, 1
  %v1894 = vperm.slane %v1890, 2
  %v1895 = vperm.slane %v1890, 3
  %v1904 = vunpack.c.l.b16 %v1886
  %v1905 = vunpack.c.h.b16 %v1886
  %v1906 = vunpack.c.l.b16 %v1887
  %v1907 = vunpack.c.h.b16 %v1887
  %v1908 = vunpack.c.l.b16 %v1888
  %v1909 = vunpack.c.h.b16 %v1888
  %v1910 = vunpack.c.l.b16 %v1889
  %v1911 = vunpack.c.h.b16 %v1889
  %v1912 = vpack.c.b16 %v1908, %v1904
  %v1913 = vpack.c.b16 %v1909, %v1905
  %v1914 = vpack.c.b16 %v1910, %v1906
  %v1915 = vpack.c.b16 %v1911, %v1907
  %v1921 = vsel %vm1238, %v1885, 0
  %1923 = vmatpush.bf16.msra.mxu0 0
  %1924 = vmatpush.bf16.msra.mxu0 0
  %1925 = vmatpush.bf16.msra.mxu0 0
  %1926 = vmatpush.bf16.msra.mxu0 0
  %1927 = vmatpush.bf16.msra.mxu0 0
  %1928 = vmatpush.bf16.msra.mxu0 0
  %1929 = vmatpush.bf16.msra.mxu0 0
  %1930 = vmatpush.bf16.msra.mxu0 %v1912
  %1931 = vmatmul.bf16.gmra.mxu0 %v1921
  %v1932 = vpop.f32.mrf.mxu0
  %v1933 = vadd.f32 %v1892, %v1932
  %v1934 = vpop.f32.mrf.mxu0
  %1935 = vdwg.mxu0
  %1936 = vmatpush.bf16.msra.mxu0 0
  %1937 = vmatpush.bf16.msra.mxu0 0
  %1938 = vmatpush.bf16.msra.mxu0 0
  %1939 = vmatpush.bf16.msra.mxu0 0
  %1940 = vmatpush.bf16.msra.mxu0 0
  %1941 = vmatpush.bf16.msra.mxu0 0
  %1942 = vmatpush.bf16.msra.mxu0 0
  %1943 = vmatpush.bf16.msra.mxu0 %v1913
  %1944 = vmatmul.bf16.gmra.mxu0 %v1921
  %v1945 = vpop.f32.mrf.mxu0
  %v1946 = vadd.f32 %v1893, %v1945
  %v1947 = vpop.f32.mrf.mxu0
  %1948 = vdwg.mxu0
  %1949 = vmatpush.bf16.msra.mxu0 0
  %1950 = vmatpush.bf16.msra.mxu0 0
  %1951 = vmatpush.bf16.msra.mxu0 0
  %1952 = vmatpush.bf16.msra.mxu0 0
  %1953 = vmatpush.bf16.msra.mxu0 0
  %1954 = vmatpush.bf16.msra.mxu0 0
  %1955 = vmatpush.bf16.msra.mxu0 0
  %1956 = vmatpush.bf16.msra.mxu0 %v1914
  %1957 = vmatmul.bf16.gmra.mxu0 %v1921
  %v1958 = vpop.f32.mrf.mxu0
  %v1959 = vadd.f32 %v1894, %v1958
  %v1960 = vpop.f32.mrf.mxu0
  %1961 = vdwg.mxu0
  %1962 = vmatpush.bf16.msra.mxu0 0
  %1963 = vmatpush.bf16.msra.mxu0 0
  %1964 = vmatpush.bf16.msra.mxu0 0
  %1965 = vmatpush.bf16.msra.mxu0 0
  %1966 = vmatpush.bf16.msra.mxu0 0
  %1967 = vmatpush.bf16.msra.mxu0 0
  %1968 = vmatpush.bf16.msra.mxu0 0
  %1969 = vmatpush.bf16.msra.mxu0 %v1915
  %1970 = vmatmul.bf16.gmra.mxu0 %v1921
  %v1971 = vpop.f32.mrf.mxu0
  %v1972 = vadd.f32 %v1895, %v1971
  %v1973 = vpop.f32.mrf.mxu0
  %1974 = vdwg.mxu0
  %v1975 = vmax.f32 %v1933, 0.0
  %v1976 = vmax.f32 %v1946, 0.0
  %v1977 = vmax.f32 %v1959, 0.0
  %v1978 = vmax.f32 %v1972, 0.0
  %v1979 = vpack.c.bf16 %v1975, %v1975
  %v1980 = vpack.c.bf16 %v1976, %v1976
  %v1981 = vpack.c.bf16 %v1977, %v1977
  %v1982 = vpack.c.bf16 %v1978, %v1978
  %v1983 = vld [vmem:[%s8] sm:$0xff]
  %v1984 = vld [vmem:[%s8 + $0x8] sm:$0xff]
  %v1985 = vld [vmem:[%s8 + $0x10] sm:$0xff]
  %v1986 = vld [vmem:[%s8 + $0x18] sm:$0xf]
  %v1987 = vld [vmem:[%s8 + $0x1c] sm:$0xff]
  %v1988 = vld [vmem:[%s8 + $0x24] sm:$0xff]
  %v1989 = vld [vmem:[%s8 + $0x2c] sm:$0xff]
  %v1990 = vld [vmem:[%s8 + $0x34] sm:$0xf]
  %v1991 = vld [vmem:[%s8 + $0x38] sm:$0xff]
  %v1992 = vld [vmem:[%s8 + $0x40] sm:$0xff]
  %v1993 = vld [vmem:[%s8 + $0x48] sm:$0xff]
  %v1994 = vld [vmem:[%s8 + $0x50] sm:$0xf]
  %v1995 = vld [vmem:[%s8 + $0x54] sm:$0xff]
  %v1996 = vld [vmem:[%s8 + $0x5c] sm:$0xff]
  %v1997 = vld [vmem:[%s8 + $0x64] sm:$0xff]
  %v1998 = vld [vmem:[%s8 + $0x6c] sm:$0xf]
  %v1999 = vld [vmem:[%s8 + $0x70] sm:$0xff]
  %v2000 = vld [vmem:[%s8 + $0x78] sm:$0xff]
  %v2001 = vld [vmem:[%s8 + $0x80] sm:$0xff]
  %v2002 = vld [vmem:[%s8 + $0x88] sm:$0xf]
  %v2003 = vld [vmem:[%s8 + $0x8c] sm:$0xff]
  %v2004 = vld [vmem:[%s8 + $0x94] sm:$0xff]
  %v2005 = vld [vmem:[%s8 + $0x9c] sm:$0xff]
  %v2006 = vld [vmem:[%s8 + $0xa4] sm:$0xf]
  %v2007 = vld [vmem:[%s8 + $0xa8] sm:$0xff]
  %v2008 = vld [vmem:[%s8 + $0xb0] sm:$0xff]
  %v2009 = vld [vmem:[%s8 + $0xb8] sm:$0xff]
  %v2010 = vld [vmem:[%s8 + $0xc0] sm:$0xf]
  %v2011 = vld [vmem:[%s8 + $0xc4] sm:$0xff]
  %v2012 = vld [vmem:[%s8 + $0xcc] sm:$0xff]
  %v2013 = vld [vmem:[%s8 + $0xd4] sm:$0xff]
  %v2014 = vld [vmem:[%s8 + $0xdc] sm:$0xf]
  %v2015 = vld [vmem:[%s8 + $0xe0] sm:$0xff]
  %v2016 = vld [vmem:[%s8 + $0xe8] sm:$0xff]
  %v2017 = vld [vmem:[%s8 + $0xf0] sm:$0xff]
  %v2018 = vld [vmem:[%s8 + $0xf8] sm:$0xf]
  %v2019 = vld [vmem:[%s8 + $0xfc] sm:$0xff]
  %v2020 = vld [vmem:[%s8 + $0x104] sm:$0xff]
  %v2021 = vld [vmem:[%s8 + $0x10c] sm:$0xff]
  %v2022 = vld [vmem:[%s8 + $0x114] sm:$0xf]
  %v2023 = vld [vmem:[%s8 + $0x118] sm:$0xff]
  %v2024 = vld [vmem:[%s8 + $0x120] sm:$0xff]
  %v2025 = vld [vmem:[%s8 + $0x128] sm:$0xff]
  %v2026 = vld [vmem:[%s8 + $0x130] sm:$0xf]
  %v2027 = vld [vmem:[%s8 + $0x134] sm:$0xff]
  %v2028 = vld [vmem:[%s8 + $0x13c] sm:$0xff]
  %v2029 = vld [vmem:[%s8 + $0x144] sm:$0xff]
  %v2030 = vld [vmem:[%s8 + $0x14c] sm:$0xf]
  %v2031 = vld [vmem:[%s8 + $0x150] sm:$0xff]
  %v2032 = vld [vmem:[%s8 + $0x158] sm:$0xff]
  %v2033 = vld [vmem:[%s8 + $0x160] sm:$0xff]
  %v2034 = vld [vmem:[%s8 + $0x168] sm:$0xf]
  %v2035 = vld [vmem:[%s8 + $0x16c] sm:$0xff]
  %v2036 = vld [vmem:[%s8 + $0x174] sm:$0xff]
  %v2037 = vld [vmem:[%s8 + $0x17c] sm:$0xff]
  %v2038 = vld [vmem:[%s8 + $0x184] sm:$0xf]
  %v2039 = vld [vmem:[%s8 + $0x188] sm:$0xff]
  %v2040 = vld [vmem:[%s8 + $0x190] sm:$0xff]
  %v2041 = vld [vmem:[%s8 + $0x198] sm:$0xff]
  %v2042 = vld [vmem:[%s8 + $0x1a0] sm:$0xf]
  %v2043 = vld [vmem:[%s8 + $0x1a4] sm:$0xff]
  %v2044 = vld [vmem:[%s8 + $0x1ac] sm:$0xff]
  %v2045 = vld [vmem:[%s8 + $0x1b4] sm:$0xff]
  %v2046 = vld [vmem:[%s8 + $0x1bc] sm:$0xf]
  %v2047 = vld [vmem:[%s8 + $0x1c0] sm:$0xff]
  %v2048 = vld [vmem:[%s8 + $0x1c8] sm:$0xff]
  %v2049 = vld [vmem:[%s8 + $0x1d0] sm:$0xff]
  %v2050 = vld [vmem:[%s8 + $0x1d8] sm:$0xf]
  %v2051 = vld [vmem:[%s8 + $0x1dc] sm:$0xff]
  %v2052 = vld [vmem:[%s8 + $0x1e4] sm:$0xff]
  %v2053 = vld [vmem:[%s8 + $0x1ec] sm:$0xff]
  %v2054 = vld [vmem:[%s8 + $0x1f4] sm:$0xf]
  %v2055 = vld [vmem:[%s8 + $0x1f8] sm:$0xff]
  %v2056 = vld [vmem:[%s8 + $0x200] sm:$0xff]
  %v2057 = vld [vmem:[%s8 + $0x208] sm:$0xff]
  %v2058 = vld [vmem:[%s8 + $0x210] sm:$0xf]
  %v2059 = vld [vmem:[%s8 + $0x214] sm:$0xff]
  %v2060 = vld [vmem:[%s8 + $0x21c] sm:$0xff]
  %v2061 = vld [vmem:[%s8 + $0x224] sm:$0xff]
  %v2062 = vld [vmem:[%s8 + $0x22c] sm:$0xf]
  %v2063 = vld [vmem:[%s8 + $0x230] sm:$0xff]
  %v2064 = vld [vmem:[%s8 + $0x238] sm:$0xff]
  %v2065 = vld [vmem:[%s8 + $0x240] sm:$0xff]
  %v2066 = vld [vmem:[%s8 + $0x248] sm:$0xf]
  %v2067 = vld [vmem:[%s8 + $0x24c] sm:$0xff]
  %v2068 = vld [vmem:[%s8 + $0x254] sm:$0xff]
  %v2069 = vld [vmem:[%s8 + $0x25c] sm:$0xff]
  %v2070 = vld [vmem:[%s8 + $0x264] sm:$0xf]
  %v2071 = vld [vmem:[%s8 + $0x268] sm:$0xff]
  %v2072 = vld [vmem:[%s8 + $0x270] sm:$0xff]
  %v2073 = vld [vmem:[%s8 + $0x278] sm:$0xff]
  %v2074 = vld [vmem:[%s8 + $0x280] sm:$0xf]
  %v2075 = vld [vmem:[%s8 + $0x284] sm:$0xff]
  %v2076 = vld [vmem:[%s8 + $0x28c] sm:$0xff]
  %v2077 = vld [vmem:[%s8 + $0x294] sm:$0xff]
  %v2078 = vld [vmem:[%s8 + $0x29c] sm:$0xf]
  %v2079 = vld [vmem:[%s8 + $0x2a0] sm:$0xff]
  %v2080 = vld [vmem:[%s8 + $0x2a8] sm:$0xff]
  %v2081 = vld [vmem:[%s8 + $0x2b0] sm:$0xff]
  %v2082 = vld [vmem:[%s8 + $0x2b8] sm:$0xf]
  %v2083 = vld [vmem:[%s8 + $0x2bc] sm:$0xff]
  %v2084 = vld [vmem:[%s8 + $0x2c4] sm:$0xff]
  %v2085 = vld [vmem:[%s8 + $0x2cc] sm:$0xff]
  %v2086 = vld [vmem:[%s8 + $0x2d4] sm:$0xf]
  %v2087 = vld [vmem:[%s8 + $0x2d8] sm:$0xff]
  %v2088 = vld [vmem:[%s8 + $0x2e0] sm:$0xff]
  %v2089 = vld [vmem:[%s8 + $0x2e8] sm:$0xff]
  %v2090 = vld [vmem:[%s8 + $0x2f0] sm:$0xf]
  %v2091 = vld [vmem:[%s8 + $0x2f4] sm:$0xff]
  %v2092 = vld [vmem:[%s8 + $0x2fc] sm:$0xff]
  %v2093 = vld [vmem:[%s8 + $0x304] sm:$0xff]
  %v2094 = vld [vmem:[%s8 + $0x30c] sm:$0xf]
  %v2095 = vld [vmem:[%s8 + $0x310] sm:$0xff]
  %v2096 = vld [vmem:[%s8 + $0x318] sm:$0xff]
  %v2097 = vld [vmem:[%s8 + $0x320] sm:$0xff]
  %v2098 = vld [vmem:[%s8 + $0x328] sm:$0xf]
  %v2099 = vld [vmem:[%s8 + $0x32c] sm:$0xff]
  %v2100 = vld [vmem:[%s8 + $0x334] sm:$0xff]
  %v2101 = vld [vmem:[%s8 + $0x33c] sm:$0xff]
  %v2102 = vld [vmem:[%s8 + $0x344] sm:$0xf]
  %v2103 = vld [vmem:[%s8 + $0x348] sm:$0xff]
  %v2104 = vld [vmem:[%s8 + $0x350] sm:$0xff]
  %v2105 = vld [vmem:[%s8 + $0x358] sm:$0xff]
  %v2106 = vld [vmem:[%s8 + $0x360] sm:$0xf]
  %v2107 = vld [vmem:[%s8 + $0x364] sm:$0xff]
  %v2108 = vld [vmem:[%s8 + $0x36c] sm:$0xff]
  %v2109 = vld [vmem:[%s8 + $0x374] sm:$0xff]
  %v2110 = vld [vmem:[%s8 + $0x37c] sm:$0xf]
  %v2111 = vld [vmem:[%s8 + $0x380] sm:$0xff]
  %v2112 = vld [vmem:[%s8 + $0x388] sm:$0xff]
  %v2113 = vld [vmem:[%s8 + $0x390] sm:$0xff]
  %v2114 = vld [vmem:[%s8 + $0x398] sm:$0xf]
  %v2115 = vld [vmem:[%s8 + $0x39c] sm:$0xff]
  %v2116 = vld [vmem:[%s8 + $0x3a4] sm:$0xff]
  %v2117 = vld [vmem:[%s8 + $0x3ac] sm:$0xff]
  %v2118 = vld [vmem:[%s8 + $0x3b4] sm:$0xf]
  %v2119 = vld [vmem:[%s8 + $0x3b8] sm:$0xff]
  %v2120 = vld [vmem:[%s8 + $0x3c0] sm:$0xff]
  %v2121 = vld [vmem:[%s8 + $0x3c8] sm:$0xff]
  %v2122 = vld [vmem:[%s8 + $0x3d0] sm:$0xf]
  %v2123 = vld [vmem:[%s8 + $0x3d4] sm:$0xff]
  %v2124 = vld [vmem:[%s8 + $0x3dc] sm:$0xff]
  %v2125 = vld [vmem:[%s8 + $0x3e4] sm:$0xff]
  %v2126 = vld [vmem:[%s8 + $0x3ec] sm:$0xf]
  %v2127 = vld [vmem:[%s8 + $0x3f0] sm:$0xff]
  %v2128 = vld [vmem:[%s8 + $0x3f8] sm:$0xff]
  %v2129 = vld [vmem:[%s8 + $0x400] sm:$0xff]
  %v2130 = vld [vmem:[%s8 + $0x408] sm:$0xf]
  %v2131 = vld [vmem:[%s8 + $0x40c] sm:$0xff]
  %v2132 = vld [vmem:[%s8 + $0x414] sm:$0xff]
  %v2133 = vld [vmem:[%s8 + $0x41c] sm:$0xff]
  %v2134 = vld [vmem:[%s8 + $0x424] sm:$0xf]
  %v2135 = vld [vmem:[%s8 + $0x428] sm:$0xff]
  %v2136 = vld [vmem:[%s8 + $0x430] sm:$0xff]
  %v2137 = vld [vmem:[%s8 + $0x438] sm:$0xff]
  %v2138 = vld [vmem:[%s8 + $0x440] sm:$0xf]
  %v2139 = vld [vmem:[%s8 + $0x444] sm:$0xff]
  %v2140 = vld [vmem:[%s8 + $0x44c] sm:$0xff]
  %v2141 = vld [vmem:[%s8 + $0x454] sm:$0xff]
  %v2142 = vld [vmem:[%s8 + $0x45c] sm:$0xf]
  %v2143 = vld [vmem:[%s8 + $0x460] sm:$0xff]
  %v2144 = vld [vmem:[%s8 + $0x468] sm:$0xff]
  %v2145 = vld [vmem:[%s8 + $0x470] sm:$0xff]
  %v2146 = vld [vmem:[%s8 + $0x478] sm:$0xf]
  %v2147 = vld [vmem:[%s8 + $0x47c] sm:$0xff]
  %v2148 = vld [vmem:[%s8 + $0x484] sm:$0xff]
  %v2149 = vld [vmem:[%s8 + $0x48c] sm:$0xff]
  %v2150 = vld [vmem:[%s8 + $0x494] sm:$0xf]
  %v2151 = vld [vmem:[%s8 + $0x498] sm:$0xff]
  %v2152 = vld [vmem:[%s8 + $0x4a0] sm:$0xff]
  %v2153 = vld [vmem:[%s8 + $0x4a8] sm:$0xff]
  %v2154 = vld [vmem:[%s8 + $0x4b0] sm:$0xf]
  %v2155 = vld [vmem:[%s8 + $0x4b4] sm:$0xff]
  %v2156 = vld [vmem:[%s8 + $0x4bc] sm:$0xff]
  %v2157 = vld [vmem:[%s8 + $0x4c4] sm:$0xff]
  %v2158 = vld [vmem:[%s8 + $0x4cc] sm:$0xf]
  %v2159 = vld [vmem:[%s8 + $0x4d0] sm:$0xff]
  %v2160 = vld [vmem:[%s8 + $0x4d8] sm:$0xff]
  %v2161 = vld [vmem:[%s8 + $0x4e0] sm:$0xff]
  %v2162 = vld [vmem:[%s8 + $0x4e8] sm:$0xf]
  %v2163 = vld [vmem:[%s8 + $0x4ec] sm:$0xff]
  %v2164 = vld [vmem:[%s8 + $0x4f4] sm:$0xff]
  %v2165 = vld [vmem:[%s8 + $0x4fc] sm:$0xff]
  %v2166 = vld [vmem:[%s8 + $0x504] sm:$0xf]
  %v2167 = vld [vmem:[%s8 + $0x508] sm:$0xff]
  %v2168 = vld [vmem:[%s8 + $0x510] sm:$0xff]
  %v2169 = vld [vmem:[%s8 + $0x518] sm:$0xff]
  %v2170 = vld [vmem:[%s8 + $0x520] sm:$0xf]
  %v2171 = vld [vmem:[%s8 + $0x524] sm:$0xff]
  %v2172 = vld [vmem:[%s8 + $0x52c] sm:$0xff]
  %v2173 = vld [vmem:[%s8 + $0x534] sm:$0xff]
  %v2174 = vld [vmem:[%s8 + $0x53c] sm:$0xf]
  %v2175 = vld [vmem:[%s8 + $0x540] sm:$0xff]
  %v2176 = vld [vmem:[%s8 + $0x548] sm:$0xff]
  %v2177 = vld [vmem:[%s8 + $0x550] sm:$0xff]
  %v2178 = vld [vmem:[%s8 + $0x558] sm:$0xf]
  %v2179 = vld [vmem:[%s9] sm:$0xff]
  %v2181 = vperm.slane %v2179, 0
  %v2182 = vperm.slane %v2179, 1
  %v2183 = vperm.slane %v2179, 2
  %v2184 = vperm.slane %v2179, 3
  %v2185 = vperm.slane %v2179, 4
  %v2186 = vperm.slane %v2179, 5
  %v2187 = vperm.slane %v2179, 6
  %v2391 = vunpack.c.l.b16 %v1983
  %v2392 = vunpack.c.h.b16 %v1983
  %v2393 = vunpack.c.l.b16 %v1984
  %v2394 = vunpack.c.h.b16 %v1984
  %v2395 = vunpack.c.l.b16 %v1985
  %v2396 = vunpack.c.h.b16 %v1985
  %v2397 = vunpack.c.l.b16 %v1986
  %v2398 = vunpack.c.l.b16 %v1987
  %v2399 = vunpack.c.h.b16 %v1987
  %v2400 = vunpack.c.l.b16 %v1988
  %v2401 = vunpack.c.h.b16 %v1988
  %v2402 = vunpack.c.l.b16 %v1989
  %v2403 = vunpack.c.h.b16 %v1989
  %v2404 = vunpack.c.l.b16 %v1990
  %v2405 = vunpack.c.l.b16 %v1991
  %v2406 = vunpack.c.h.b16 %v1991
  %v2407 = vunpack.c.l.b16 %v1992
  %v2408 = vunpack.c.h.b16 %v1992
  %v2409 = vunpack.c.l.b16 %v1993
  %v2410 = vunpack.c.h.b16 %v1993
  %v2411 = vunpack.c.l.b16 %v1994
  %v2412 = vunpack.c.l.b16 %v1995
  %v2413 = vunpack.c.h.b16 %v1995
  %v2414 = vunpack.c.l.b16 %v1996
  %v2415 = vunpack.c.h.b16 %v1996
  %v2416 = vunpack.c.l.b16 %v1997
  %v2417 = vunpack.c.h.b16 %v1997
  %v2418 = vunpack.c.l.b16 %v1998
  %v2419 = vunpack.c.l.b16 %v1999
  %v2420 = vunpack.c.h.b16 %v1999
  %v2421 = vunpack.c.l.b16 %v2000
  %v2422 = vunpack.c.h.b16 %v2000
  %v2423 = vunpack.c.l.b16 %v2001
  %v2424 = vunpack.c.h.b16 %v2001
  %v2425 = vunpack.c.l.b16 %v2002
  %v2426 = vunpack.c.l.b16 %v2003
  %v2427 = vunpack.c.h.b16 %v2003
  %v2428 = vunpack.c.l.b16 %v2004
  %v2429 = vunpack.c.h.b16 %v2004
  %v2430 = vunpack.c.l.b16 %v2005
  %v2431 = vunpack.c.h.b16 %v2005
  %v2432 = vunpack.c.l.b16 %v2006
  %v2433 = vunpack.c.l.b16 %v2007
  %v2434 = vunpack.c.h.b16 %v2007
  %v2435 = vunpack.c.l.b16 %v2008
  %v2436 = vunpack.c.h.b16 %v2008
  %v2437 = vunpack.c.l.b16 %v2009
  %v2438 = vunpack.c.h.b16 %v2009
  %v2439 = vunpack.c.l.b16 %v2010
  %v2440 = vunpack.c.l.b16 %v2011
  %v2441 = vunpack.c.h.b16 %v2011
  %v2442 = vunpack.c.l.b16 %v2012
  %v2443 = vunpack.c.h.b16 %v2012
  %v2444 = vunpack.c.l.b16 %v2013
  %v2445 = vunpack.c.h.b16 %v2013
  %v2446 = vunpack.c.l.b16 %v2014
  %v2447 = vunpack.c.l.b16 %v2015
  %v2448 = vunpack.c.h.b16 %v2015
  %v2449 = vunpack.c.l.b16 %v2016
  %v2450 = vunpack.c.h.b16 %v2016
  %v2451 = vunpack.c.l.b16 %v2017
  %v2452 = vunpack.c.h.b16 %v2017
  %v2453 = vunpack.c.l.b16 %v2018
  %v2454 = vunpack.c.l.b16 %v2019
  %v2455 = vunpack.c.h.b16 %v2019
  %v2456 = vunpack.c.l.b16 %v2020
  %v2457 = vunpack.c.h.b16 %v2020
  %v2458 = vunpack.c.l.b16 %v2021
  %v2459 = vunpack.c.h.b16 %v2021
  %v2460 = vunpack.c.l.b16 %v2022
  %v2461 = vunpack.c.l.b16 %v2023
  %v2462 = vunpack.c.h.b16 %v2023
  %v2463 = vunpack.c.l.b16 %v2024
  %v2464 = vunpack.c.h.b16 %v2024
  %v2465 = vunpack.c.l.b16 %v2025
  %v2466 = vunpack.c.h.b16 %v2025
  %v2467 = vunpack.c.l.b16 %v2026
  %v2468 = vunpack.c.l.b16 %v2027
  %v2469 = vunpack.c.h.b16 %v2027
  %v2470 = vunpack.c.l.b16 %v2028
  %v2471 = vunpack.c.h.b16 %v2028
  %v2472 = vunpack.c.l.b16 %v2029
  %v2473 = vunpack.c.h.b16 %v2029
  %v2474 = vunpack.c.l.b16 %v2030
  %v2475 = vunpack.c.l.b16 %v2031
  %v2476 = vunpack.c.h.b16 %v2031
  %v2477 = vunpack.c.l.b16 %v2032
  %v2478 = vunpack.c.h.b16 %v2032
  %v2479 = vunpack.c.l.b16 %v2033
  %v2480 = vunpack.c.h.b16 %v2033
  %v2481 = vunpack.c.l.b16 %v2034
  %v2482 = vunpack.c.l.b16 %v2035
  %v2483 = vunpack.c.h.b16 %v2035
  %v2484 = vunpack.c.l.b16 %v2036
  %v2485 = vunpack.c.h.b16 %v2036
  %v2486 = vunpack.c.l.b16 %v2037
  %v2487 = vunpack.c.h.b16 %v2037
  %v2488 = vunpack.c.l.b16 %v2038
  %v2489 = vunpack.c.l.b16 %v2039
  %v2490 = vunpack.c.h.b16 %v2039
  %v2491 = vunpack.c.l.b16 %v2040
  %v2492 = vunpack.c.h.b16 %v2040
  %v2493 = vunpack.c.l.b16 %v2041
  %v2494 = vunpack.c.h.b16 %v2041
  %v2495 = vunpack.c.l.b16 %v2042
  %v2496 = vunpack.c.l.b16 %v2043
  %v2497 = vunpack.c.h.b16 %v2043
  %v2498 = vunpack.c.l.b16 %v2044
  %v2499 = vunpack.c.h.b16 %v2044
  %v2500 = vunpack.c.l.b16 %v2045
  %v2501 = vunpack.c.h.b16 %v2045
  %v2502 = vunpack.c.l.b16 %v2046
  %v2503 = vunpack.c.l.b16 %v2047
  %v2504 = vunpack.c.h.b16 %v2047
  %v2505 = vunpack.c.l.b16 %v2048
  %v2506 = vunpack.c.h.b16 %v2048
  %v2507 = vunpack.c.l.b16 %v2049
  %v2508 = vunpack.c.h.b16 %v2049
  %v2509 = vunpack.c.l.b16 %v2050
  %v2510 = vunpack.c.l.b16 %v2051
  %v2511 = vunpack.c.h.b16 %v2051
  %v2512 = vunpack.c.l.b16 %v2052
  %v2513 = vunpack.c.h.b16 %v2052
  %v2514 = vunpack.c.l.b16 %v2053
  %v2515 = vunpack.c.h.b16 %v2053
  %v2516 = vunpack.c.l.b16 %v2054
  %v2517 = vunpack.c.l.b16 %v2055
  %v2518 = vunpack.c.h.b16 %v2055
  %v2519 = vunpack.c.l.b16 %v2056
  %v2520 = vunpack.c.h.b16 %v2056
  %v2521 = vunpack.c.l.b16 %v2057
  %v2522 = vunpack.c.h.b16 %v2057
  %v2523 = vunpack.c.l.b16 %v2058
  %v2524 = vunpack.c.l.b16 %v2059
  %v2525 = vunpack.c.h.b16 %v2059
  %v2526 = vunpack.c.l.b16 %v2060
  %v2527 = vunpack.c.h.b16 %v2060
  %v2528 = vunpack.c.l.b16 %v2061
  %v2529 = vunpack.c.h.b16 %v2061
  %v2530 = vunpack.c.l.b16 %v2062
  %v2531 = vunpack.c.l.b16 %v2063
  %v2532 = vunpack.c.h.b16 %v2063
  %v2533 = vunpack.c.l.b16 %v2064
  %v2534 = vunpack.c.h.b16 %v2064
  %v2535 = vunpack.c.l.b16 %v2065
  %v2536 = vunpack.c.h.b16 %v2065
  %v2537 = vunpack.c.l.b16 %v2066
  %v2538 = vunpack.c.l.b16 %v2067
  %v2539 = vunpack.c.h.b16 %v2067
  %v2540 = vunpack.c.l.b16 %v2068
  %v2541 = vunpack.c.h.b16 %v2068
  %v2542 = vunpack.c.l.b16 %v2069
  %v2543 = vunpack.c.h.b16 %v2069
  %v2544 = vunpack.c.l.b16 %v2070
  %v2545 = vunpack.c.l.b16 %v2071
  %v2546 = vunpack.c.h.b16 %v2071
  %v2547 = vunpack.c.l.b16 %v2072
  %v2548 = vunpack.c.h.b16 %v2072
  %v2549 = vunpack.c.l.b16 %v2073
  %v2550 = vunpack.c.h.b16 %v2073
  %v2551 = vunpack.c.l.b16 %v2074
  %v2552 = vunpack.c.l.b16 %v2075
  %v2553 = vunpack.c.h.b16 %v2075
  %v2554 = vunpack.c.l.b16 %v2076
  %v2555 = vunpack.c.h.b16 %v2076
  %v2556 = vunpack.c.l.b16 %v2077
  %v2557 = vunpack.c.h.b16 %v2077
  %v2558 = vunpack.c.l.b16 %v2078
  %v2559 = vunpack.c.l.b16 %v2079
  %v2560 = vunpack.c.h.b16 %v2079
  %v2561 = vunpack.c.l.b16 %v2080
  %v2562 = vunpack.c.h.b16 %v2080
  %v2563 = vunpack.c.l.b16 %v2081
  %v2564 = vunpack.c.h.b16 %v2081
  %v2565 = vunpack.c.l.b16 %v2082
  %v2566 = vunpack.c.l.b16 %v2083
  %v2567 = vunpack.c.h.b16 %v2083
  %v2568 = vunpack.c.l.b16 %v2084
  %v2569 = vunpack.c.h.b16 %v2084
  %v2570 = vunpack.c.l.b16 %v2085
  %v2571 = vunpack.c.h.b16 %v2085
  %v2572 = vunpack.c.l.b16 %v2086
  %v2573 = vunpack.c.l.b16 %v2087
  %v2574 = vunpack.c.h.b16 %v2087
  %v2575 = vunpack.c.l.b16 %v2088
  %v2576 = vunpack.c.h.b16 %v2088
  %v2577 = vunpack.c.l.b16 %v2089
  %v2578 = vunpack.c.h.b16 %v2089
  %v2579 = vunpack.c.l.b16 %v2090
  %v2580 = vunpack.c.l.b16 %v2091
  %v2581 = vunpack.c.h.b16 %v2091
  %v2582 = vunpack.c.l.b16 %v2092
  %v2583 = vunpack.c.h.b16 %v2092
  %v2584 = vunpack.c.l.b16 %v2093
  %v2585 = vunpack.c.h.b16 %v2093
  %v2586 = vunpack.c.l.b16 %v2094
  %v2587 = vunpack.c.l.b16 %v2095
  %v2588 = vunpack.c.h.b16 %v2095
  %v2589 = vunpack.c.l.b16 %v2096
  %v2590 = vunpack.c.h.b16 %v2096
  %v2591 = vunpack.c.l.b16 %v2097
  %v2592 = vunpack.c.h.b16 %v2097
  %v2593 = vunpack.c.l.b16 %v2098
  %v2594 = vunpack.c.l.b16 %v2099
  %v2595 = vunpack.c.h.b16 %v2099
  %v2596 = vunpack.c.l.b16 %v2100
  %v2597 = vunpack.c.h.b16 %v2100
  %v2598 = vunpack.c.l.b16 %v2101
  %v2599 = vunpack.c.h.b16 %v2101
  %v2600 = vunpack.c.l.b16 %v2102
  %v2601 = vunpack.c.l.b16 %v2103
  %v2602 = vunpack.c.h.b16 %v2103
  %v2603 = vunpack.c.l.b16 %v2104
  %v2604 = vunpack.c.h.b16 %v2104
  %v2605 = vunpack.c.l.b16 %v2105
  %v2606 = vunpack.c.h.b16 %v2105
  %v2607 = vunpack.c.l.b16 %v2106
  %v2608 = vunpack.c.l.b16 %v2107
  %v2609 = vunpack.c.h.b16 %v2107
  %v2610 = vunpack.c.l.b16 %v2108
  %v2611 = vunpack.c.h.b16 %v2108
  %v2612 = vunpack.c.l.b16 %v2109
  %v2613 = vunpack.c.h.b16 %v2109
  %v2614 = vunpack.c.l.b16 %v2110
  %v2615 = vunpack.c.l.b16 %v2111
  %v2616 = vunpack.c.h.b16 %v2111
  %v2617 = vunpack.c.l.b16 %v2112
  %v2618 = vunpack.c.h.b16 %v2112
  %v2619 = vunpack.c.l.b16 %v2113
  %v2620 = vunpack.c.h.b16 %v2113
  %v2621 = vunpack.c.l.b16 %v2114
  %v2622 = vunpack.c.l.b16 %v2115
  %v2623 = vunpack.c.h.b16 %v2115
  %v2624 = vunpack.c.l.b16 %v2116
  %v2625 = vunpack.c.h.b16 %v2116
  %v2626 = vunpack.c.l.b16 %v2117
  %v2627 = vunpack.c.h.b16 %v2117
  %v2628 = vunpack.c.l.b16 %v2118
  %v2629 = vunpack.c.l.b16 %v2119
  %v2630 = vunpack.c.h.b16 %v2119
  %v2631 = vunpack.c.l.b16 %v2120
  %v2632 = vunpack.c.h.b16 %v2120
  %v2633 = vunpack.c.l.b16 %v2121
  %v2634 = vunpack.c.h.b16 %v2121
  %v2635 = vunpack.c.l.b16 %v2122
  %v2636 = vunpack.c.l.b16 %v2123
  %v2637 = vunpack.c.h.b16 %v2123
  %v2638 = vunpack.c.l.b16 %v2124
  %v2639 = vunpack.c.h.b16 %v2124
  %v2640 = vunpack.c.l.b16 %v2125
  %v2641 = vunpack.c.h.b16 %v2125
  %v2642 = vunpack.c.l.b16 %v2126
  %v2643 = vunpack.c.l.b16 %v2127
  %v2644 = vunpack.c.h.b16 %v2127
  %v2645 = vunpack.c.l.b16 %v2128
  %v2646 = vunpack.c.h.b16 %v2128
  %v2647 = vunpack.c.l.b16 %v2129
  %v2648 = vunpack.c.h.b16 %v2129
  %v2649 = vunpack.c.l.b16 %v2130
  %v2650 = vunpack.c.l.b16 %v2131
  %v2651 = vunpack.c.h.b16 %v2131
  %v2652 = vunpack.c.l.b16 %v2132
  %v2653 = vunpack.c.h.b16 %v2132
  %v2654 = vunpack.c.l.b16 %v2133
  %v2655 = vunpack.c.h.b16 %v2133
  %v2656 = vunpack.c.l.b16 %v2134
  %v2657 = vunpack.c.l.b16 %v2135
  %v2658 = vunpack.c.h.b16 %v2135
  %v2659 = vunpack.c.l.b16 %v2136
  %v2660 = vunpack.c.h.b16 %v2136
  %v2661 = vunpack.c.l.b16 %v2137
  %v2662 = vunpack.c.h.b16 %v2137
  %v2663 = vunpack.c.l.b16 %v2138
  %v2664 = vunpack.c.l.b16 %v2139
  %v2665 = vunpack.c.h.b16 %v2139
  %v2666 = vunpack.c.l.b16 %v2140
  %v2667 = vunpack.c.h.b16 %v2140
  %v2668 = vunpack.c.l.b16 %v2141
  %v2669 = vunpack.c.h.b16 %v2141
  %v2670 = vunpack.c.l.b16 %v2142
  %v2671 = vunpack.c.l.b16 %v2143
  %v2672 = vunpack.c.h.b16 %v2143
  %v2673 = vunpack.c.l.b16 %v2144
  %v2674 = vunpack.c.h.b16 %v2144
  %v2675 = vunpack.c.l.b16 %v2145
  %v2676 = vunpack.c.h.b16 %v2145
  %v2677 = vunpack.c.l.b16 %v2146
  %v2678 = vunpack.c.l.b16 %v2147
  %v2679 = vunpack.c.h.b16 %v2147
  %v2680 = vunpack.c.l.b16 %v2148
  %v2681 = vunpack.c.h.b16 %v2148
  %v2682 = vunpack.c.l.b16 %v2149
  %v2683 = vunpack.c.h.b16 %v2149
  %v2684 = vunpack.c.l.b16 %v2150
  %v2685 = vunpack.c.l.b16 %v2151
  %v2686 = vunpack.c.h.b16 %v2151
  %v2687 = vunpack.c.l.b16 %v2152
  %v2688 = vunpack.c.h.b16 %v2152
  %v2689 = vunpack.c.l.b16 %v2153
  %v2690 = vunpack.c.h.b16 %v2153
  %v2691 = vunpack.c.l.b16 %v2154
  %v2692 = vunpack.c.l.b16 %v2155
  %v2693 = vunpack.c.h.b16 %v2155
  %v2694 = vunpack.c.l.b16 %v2156
  %v2695 = vunpack.c.h.b16 %v2156
  %v2696 = vunpack.c.l.b16 %v2157
  %v2697 = vunpack.c.h.b16 %v2157
  %v2698 = vunpack.c.l.b16 %v2158
  %v2699 = vunpack.c.l.b16 %v2159
  %v2700 = vunpack.c.h.b16 %v2159
  %v2701 = vunpack.c.l.b16 %v2160
  %v2702 = vunpack.c.h.b16 %v2160
  %v2703 = vunpack.c.l.b16 %v2161
  %v2704 = vunpack.c.h.b16 %v2161
  %v2705 = vunpack.c.l.b16 %v2162
  %v2706 = vunpack.c.l.b16 %v2163
  %v2707 = vunpack.c.h.b16 %v2163
  %v2708 = vunpack.c.l.b16 %v2164
  %v2709 = vunpack.c.h.b16 %v2164
  %v2710 = vunpack.c.l.b16 %v2165
  %v2711 = vunpack.c.h.b16 %v2165
  %v2712 = vunpack.c.l.b16 %v2166
  %v2713 = vunpack.c.l.b16 %v2167
  %v2714 = vunpack.c.h.b16 %v2167
  %v2715 = vunpack.c.l.b16 %v2168
  %v2716 = vunpack.c.h.b16 %v2168
  %v2717 = vunpack.c.l.b16 %v2169
  %v2718 = vunpack.c.h.b16 %v2169
  %v2719 = vunpack.c.l.b16 %v2170
  %v2720 = vunpack.c.l.b16 %v2171
  %v2721 = vunpack.c.h.b16 %v2171
  %v2722 = vunpack.c.l.b16 %v2172
  %v2723 = vunpack.c.h.b16 %v2172
  %v2724 = vunpack.c.l.b16 %v2173
  %v2725 = vunpack.c.h.b16 %v2173
  %v2726 = vunpack.c.l.b16 %v2174
  %v2727 = vunpack.c.l.b16 %v2175
  %v2728 = vunpack.c.h.b16 %v2175
  %v2729 = vunpack.c.l.b16 %v2176
  %v2730 = vunpack.c.h.b16 %v2176
  %v2731 = vunpack.c.l.b16 %v2177
  %v2732 = vunpack.c.h.b16 %v2177
  %v2733 = vunpack.c.l.b16 %v2178
  %v2734 = vpack.c.b16 %v2398, %v2391
  %v2735 = vpack.c.b16 %v2399, %v2392
  %v2736 = vpack.c.b16 %v2400, %v2393
  %v2737 = vpack.c.b16 %v2401, %v2394
  %v2738 = vpack.c.b16 %v2402, %v2395
  %v2739 = vpack.c.b16 %v2403, %v2396
  %v2740 = vpack.c.b16 %v2404, %v2397
  %v2741 = vpack.c.b16 %v2412, %v2405
  %v2742 = vpack.c.b16 %v2413, %v2406
  %v2743 = vpack.c.b16 %v2414, %v2407
  %v2744 = vpack.c.b16 %v2415, %v2408
  %v2745 = vpack.c.b16 %v2416, %v2409
  %v2746 = vpack.c.b16 %v2417, %v2410
  %v2747 = vpack.c.b16 %v2418, %v2411
  %v2748 = vpack.c.b16 %v2426, %v2419
  %v2749 = vpack.c.b16 %v2427, %v2420
  %v2750 = vpack.c.b16 %v2428, %v2421
  %v2751 = vpack.c.b16 %v2429, %v2422
  %v2752 = vpack.c.b16 %v2430, %v2423
  %v2753 = vpack.c.b16 %v2431, %v2424
  %v2754 = vpack.c.b16 %v2432, %v2425
  %v2755 = vpack.c.b16 %v2440, %v2433
  %v2756 = vpack.c.b16 %v2441, %v2434
  %v2757 = vpack.c.b16 %v2442, %v2435
  %v2758 = vpack.c.b16 %v2443, %v2436
  %v2759 = vpack.c.b16 %v2444, %v2437
  %v2760 = vpack.c.b16 %v2445, %v2438
  %v2761 = vpack.c.b16 %v2446, %v2439
  %v2762 = vpack.c.b16 %v2454, %v2447
  %v2763 = vpack.c.b16 %v2455, %v2448
  %v2764 = vpack.c.b16 %v2456, %v2449
  %v2765 = vpack.c.b16 %v2457, %v2450
  %v2766 = vpack.c.b16 %v2458, %v2451
  %v2767 = vpack.c.b16 %v2459, %v2452
  %v2768 = vpack.c.b16 %v2460, %v2453
  %v2769 = vpack.c.b16 %v2468, %v2461
  %v2770 = vpack.c.b16 %v2469, %v2462
  %v2771 = vpack.c.b16 %v2470, %v2463
  %v2772 = vpack.c.b16 %v2471, %v2464
  %v2773 = vpack.c.b16 %v2472, %v2465
  %v2774 = vpack.c.b16 %v2473, %v2466
  %v2775 = vpack.c.b16 %v2474, %v2467
  %v2776 = vpack.c.b16 %v2482, %v2475
  %v2777 = vpack.c.b16 %v2483, %v2476
  %v2778 = vpack.c.b16 %v2484, %v2477
  %v2779 = vpack.c.b16 %v2485, %v2478
  %v2780 = vpack.c.b16 %v2486, %v2479
  %v2781 = vpack.c.b16 %v2487, %v2480
  %v2782 = vpack.c.b16 %v2488, %v2481
  %v2783 = vpack.c.b16 %v2496, %v2489
  %v2784 = vpack.c.b16 %v2497, %v2490
  %v2785 = vpack.c.b16 %v2498, %v2491
  %v2786 = vpack.c.b16 %v2499, %v2492
  %v2787 = vpack.c.b16 %v2500, %v2493
  %v2788 = vpack.c.b16 %v2501, %v2494
  %v2789 = vpack.c.b16 %v2502, %v2495
  %v2790 = vpack.c.b16 %v2510, %v2503
  %v2791 = vpack.c.b16 %v2511, %v2504
  %v2792 = vpack.c.b16 %v2512, %v2505
  %v2793 = vpack.c.b16 %v2513, %v2506
  %v2794 = vpack.c.b16 %v2514, %v2507
  %v2795 = vpack.c.b16 %v2515, %v2508
  %v2796 = vpack.c.b16 %v2516, %v2509
  %v2797 = vpack.c.b16 %v2524, %v2517
  %v2798 = vpack.c.b16 %v2525, %v2518
  %v2799 = vpack.c.b16 %v2526, %v2519
  %v2800 = vpack.c.b16 %v2527, %v2520
  %v2801 = vpack.c.b16 %v2528, %v2521
  %v2802 = vpack.c.b16 %v2529, %v2522
  %v2803 = vpack.c.b16 %v2530, %v2523
  %v2804 = vpack.c.b16 %v2538, %v2531
  %v2805 = vpack.c.b16 %v2539, %v2532
  %v2806 = vpack.c.b16 %v2540, %v2533
  %v2807 = vpack.c.b16 %v2541, %v2534
  %v2808 = vpack.c.b16 %v2542, %v2535
  %v2809 = vpack.c.b16 %v2543, %v2536
  %v2810 = vpack.c.b16 %v2544, %v2537
  %v2811 = vpack.c.b16 %v2552, %v2545
  %v2812 = vpack.c.b16 %v2553, %v2546
  %v2813 = vpack.c.b16 %v2554, %v2547
  %v2814 = vpack.c.b16 %v2555, %v2548
  %v2815 = vpack.c.b16 %v2556, %v2549
  %v2816 = vpack.c.b16 %v2557, %v2550
  %v2817 = vpack.c.b16 %v2558, %v2551
  %v2818 = vpack.c.b16 %v2566, %v2559
  %v2819 = vpack.c.b16 %v2567, %v2560
  %v2820 = vpack.c.b16 %v2568, %v2561
  %v2821 = vpack.c.b16 %v2569, %v2562
  %v2822 = vpack.c.b16 %v2570, %v2563
  %v2823 = vpack.c.b16 %v2571, %v2564
  %v2824 = vpack.c.b16 %v2572, %v2565
  %v2825 = vpack.c.b16 %v2580, %v2573
  %v2826 = vpack.c.b16 %v2581, %v2574
  %v2827 = vpack.c.b16 %v2582, %v2575
  %v2828 = vpack.c.b16 %v2583, %v2576
  %v2829 = vpack.c.b16 %v2584, %v2577
  %v2830 = vpack.c.b16 %v2585, %v2578
  %v2831 = vpack.c.b16 %v2586, %v2579
  %v2832 = vpack.c.b16 %v2594, %v2587
  %v2833 = vpack.c.b16 %v2595, %v2588
  %v2834 = vpack.c.b16 %v2596, %v2589
  %v2835 = vpack.c.b16 %v2597, %v2590
  %v2836 = vpack.c.b16 %v2598, %v2591
  %v2837 = vpack.c.b16 %v2599, %v2592
  %v2838 = vpack.c.b16 %v2600, %v2593
  %v2839 = vpack.c.b16 %v2608, %v2601
  %v2840 = vpack.c.b16 %v2609, %v2602
  %v2841 = vpack.c.b16 %v2610, %v2603
  %v2842 = vpack.c.b16 %v2611, %v2604
  %v2843 = vpack.c.b16 %v2612, %v2605
  %v2844 = vpack.c.b16 %v2613, %v2606
  %v2845 = vpack.c.b16 %v2614, %v2607
  %v2846 = vpack.c.b16 %v2622, %v2615
  %v2847 = vpack.c.b16 %v2623, %v2616
  %v2848 = vpack.c.b16 %v2624, %v2617
  %v2849 = vpack.c.b16 %v2625, %v2618
  %v2850 = vpack.c.b16 %v2626, %v2619
  %v2851 = vpack.c.b16 %v2627, %v2620
  %v2852 = vpack.c.b16 %v2628, %v2621
  %v2853 = vpack.c.b16 %v2636, %v2629
  %v2854 = vpack.c.b16 %v2637, %v2630
  %v2855 = vpack.c.b16 %v2638, %v2631
  %v2856 = vpack.c.b16 %v2639, %v2632
  %v2857 = vpack.c.b16 %v2640, %v2633
  %v2858 = vpack.c.b16 %v2641, %v2634
  %v2859 = vpack.c.b16 %v2642, %v2635
  %v2860 = vpack.c.b16 %v2650, %v2643
  %v2861 = vpack.c.b16 %v2651, %v2644
  %v2862 = vpack.c.b16 %v2652, %v2645
  %v2863 = vpack.c.b16 %v2653, %v2646
  %v2864 = vpack.c.b16 %v2654, %v2647
  %v2865 = vpack.c.b16 %v2655, %v2648
  %v2866 = vpack.c.b16 %v2656, %v2649
  %v2867 = vpack.c.b16 %v2664, %v2657
  %v2868 = vpack.c.b16 %v2665, %v2658
  %v2869 = vpack.c.b16 %v2666, %v2659
  %v2870 = vpack.c.b16 %v2667, %v2660
  %v2871 = vpack.c.b16 %v2668, %v2661
  %v2872 = vpack.c.b16 %v2669, %v2662
  %v2873 = vpack.c.b16 %v2670, %v2663
  %v2874 = vpack.c.b16 %v2678, %v2671
  %v2875 = vpack.c.b16 %v2679, %v2672
  %v2876 = vpack.c.b16 %v2680, %v2673
  %v2877 = vpack.c.b16 %v2681, %v2674
  %v2878 = vpack.c.b16 %v2682, %v2675
  %v2879 = vpack.c.b16 %v2683, %v2676
  %v2880 = vpack.c.b16 %v2684, %v2677
  %v2881 = vpack.c.b16 %v2692, %v2685
  %v2882 = vpack.c.b16 %v2693, %v2686
  %v2883 = vpack.c.b16 %v2694, %v2687
  %v2884 = vpack.c.b16 %v2695, %v2688
  %v2885 = vpack.c.b16 %v2696, %v2689
  %v2886 = vpack.c.b16 %v2697, %v2690
  %v2887 = vpack.c.b16 %v2698, %v2691
  %v2888 = vpack.c.b16 %v2706, %v2699
  %v2889 = vpack.c.b16 %v2707, %v2700
  %v2890 = vpack.c.b16 %v2708, %v2701
  %v2891 = vpack.c.b16 %v2709, %v2702
  %v2892 = vpack.c.b16 %v2710, %v2703
  %v2893 = vpack.c.b16 %v2711, %v2704
  %v2894 = vpack.c.b16 %v2712, %v2705
  %v2895 = vpack.c.b16 %v2720, %v2713
  %v2896 = vpack.c.b16 %v2721, %v2714
  %v2897 = vpack.c.b16 %v2722, %v2715
  %v2898 = vpack.c.b16 %v2723, %v2716
  %v2899 = vpack.c.b16 %v2724, %v2717
  %v2900 = vpack.c.b16 %v2725, %v2718
  %v2901 = vpack.c.b16 %v2726, %v2719
  %v2902 = vpack.c.b16 %v2727, %v2727
  %v2903 = vpack.c.b16 %v2728, %v2728
  %v2904 = vpack.c.b16 %v2729, %v2729
  %v2905 = vpack.c.b16 %v2730, %v2730
  %v2906 = vpack.c.b16 %v2731, %v2731
  %v2907 = vpack.c.b16 %v2732, %v2732
  %v2908 = vpack.c.b16 %v2733, %v2733
  %v3078 = vsel %vm1814, %v1982, 0
  %v3081 = vsel %vm1818, %v2902, 0
  %v3084 = vsel %vm1818, %v2903, 0
  %v3087 = vsel %vm1818, %v2904, 0
  %v3090 = vsel %vm1818, %v2905, 0
  %v3093 = vsel %vm1818, %v2906, 0
  %v3096 = vsel %vm1818, %v2907, 0
  %v3099 = vsel %vm1818, %v2908, 0
  %3101 = vmatpush.bf16.msra.mxu0 %v2783
  %3102 = vmatpush.bf16.msra.mxu0 %v2776
  %3103 = vmatpush.bf16.msra.mxu0 %v2769
  %3104 = vmatpush.bf16.msra.mxu0 %v2762
  %3105 = vmatpush.bf16.msra.mxu0 %v2755
  %3106 = vmatpush.bf16.msra.mxu0 %v2748
  %3107 = vmatpush.bf16.msra.mxu0 %v2741
  %3108 = vmatpush.bf16.msra.mxu0 %v2734
  %3109 = vmatmul.bf16.gmra.mxu0 %v1979
  %v3110 = vpop.f32.mrf.mxu0
  %v3111 = vadd.f32 %v2181, %v3110
  %v3112 = vpop.f32.mrf.mxu0
  %3113 = vdwg.mxu0
  %3114 = vmatpush.bf16.msra.mxu0 %v2839
  %3115 = vmatpush.bf16.msra.mxu0 %v2832
  %3116 = vmatpush.bf16.msra.mxu0 %v2825
  %3117 = vmatpush.bf16.msra.mxu0 %v2818
  %3118 = vmatpush.bf16.msra.mxu0 %v2811
  %3119 = vmatpush.bf16.msra.mxu0 %v2804
  %3120 = vmatpush.bf16.msra.mxu0 %v2797
  %3121 = vmatpush.bf16.msra.mxu0 %v2790
  %3122 = vmatmul.bf16.gmra.mxu0 %v1980
  %v3123 = vpop.f32.mrf.mxu0
  %v3124 = vadd.f32 %v3111, %v3123
  %v3125 = vpop.f32.mrf.mxu0
  %3126 = vdwg.mxu0
  %3127 = vmatpush.bf16.msra.mxu0 %v2895
  %3128 = vmatpush.bf16.msra.mxu0 %v2888
  %3129 = vmatpush.bf16.msra.mxu0 %v2881
  %3130 = vmatpush.bf16.msra.mxu0 %v2874
  %3131 = vmatpush.bf16.msra.mxu0 %v2867
  %3132 = vmatpush.bf16.msra.mxu0 %v2860
  %3133 = vmatpush.bf16.msra.mxu0 %v2853
  %3134 = vmatpush.bf16.msra.mxu0 %v2846
  %3135 = vmatmul.bf16.gmra.mxu0 %v1981
  %v3136 = vpop.f32.mrf.mxu0
  %v3137 = vadd.f32 %v3124, %v3136
  %v3138 = vpop.f32.mrf.mxu0
  %3139 = vdwg.mxu0
  %3140 = vmatpush.bf16.msra.mxu0 0
  %3141 = vmatpush.bf16.msra.mxu0 0
  %3142 = vmatpush.bf16.msra.mxu0 0
  %3143 = vmatpush.bf16.msra.mxu0 0
  %3144 = vmatpush.bf16.msra.mxu0 0
  %3145 = vmatpush.bf16.msra.mxu0 0
  %3146 = vmatpush.bf16.msra.mxu0 0
  %3147 = vmatpush.bf16.msra.mxu0 %v3081
  %3148 = vmatmul.bf16.gmra.mxu0 %v3078
  %v3149 = vpop.f32.mrf.mxu0
  %v3150 = vadd.f32 %v3137, %v3149
  %v3151 = vpop.f32.mrf.mxu0
  %3152 = vdwg.mxu0
  %3153 = vmatpush.bf16.msra.mxu0 %v2784
  %3154 = vmatpush.bf16.msra.mxu0 %v2777
  %3155 = vmatpush.bf16.msra.mxu0 %v2770
  %3156 = vmatpush.bf16.msra.mxu0 %v2763
  %3157 = vmatpush.bf16.msra.mxu0 %v2756
  %3158 = vmatpush.bf16.msra.mxu0 %v2749
  %3159 = vmatpush.bf16.msra.mxu0 %v2742
  %3160 = vmatpush.bf16.msra.mxu0 %v2735
  %3161 = vmatmul.bf16.gmra.mxu0 %v1979
  %v3162 = vpop.f32.mrf.mxu0
  %v3163 = vadd.f32 %v2182, %v3162
  %v3164 = vpop.f32.mrf.mxu0
  %3165 = vdwg.mxu0
  %3166 = vmatpush.bf16.msra.mxu0 %v2840
  %3167 = vmatpush.bf16.msra.mxu0 %v2833
  %3168 = vmatpush.bf16.msra.mxu0 %v2826
  %3169 = vmatpush.bf16.msra.mxu0 %v2819
  %3170 = vmatpush.bf16.msra.mxu0 %v2812
  %3171 = vmatpush.bf16.msra.mxu0 %v2805
  %3172 = vmatpush.bf16.msra.mxu0 %v2798
  %3173 = vmatpush.bf16.msra.mxu0 %v2791
  %3174 = vmatmul.bf16.gmra.mxu0 %v1980
  %v3175 = vpop.f32.mrf.mxu0
  %v3176 = vadd.f32 %v3163, %v3175
  %v3177 = vpop.f32.mrf.mxu0
  %3178 = vdwg.mxu0
  %3179 = vmatpush.bf16.msra.mxu0 %v2896
  %3180 = vmatpush.bf16.msra.mxu0 %v2889
  %3181 = vmatpush.bf16.msra.mxu0 %v2882
  %3182 = vmatpush.bf16.msra.mxu0 %v2875
  %3183 = vmatpush.bf16.msra.mxu0 %v2868
  %3184 = vmatpush.bf16.msra.mxu0 %v2861
  %3185 = vmatpush.bf16.msra.mxu0 %v2854
  %3186 = vmatpush.bf16.msra.mxu0 %v2847
  %3187 = vmatmul.bf16.gmra.mxu0 %v1981
  %v3188 = vpop.f32.mrf.mxu0
  %v3189 = vadd.f32 %v3176, %v3188
  %v3190 = vpop.f32.mrf.mxu0
  %3191 = vdwg.mxu0
  %3192 = vmatpush.bf16.msra.mxu0 0
  %3193 = vmatpush.bf16.msra.mxu0 0
  %3194 = vmatpush.bf16.msra.mxu0 0
  %3195 = vmatpush.bf16.msra.mxu0 0
  %3196 = vmatpush.bf16.msra.mxu0 0
  %3197 = vmatpush.bf16.msra.mxu0 0
  %3198 = vmatpush.bf16.msra.mxu0 0
  %3199 = vmatpush.bf16.msra.mxu0 %v3084
  %3200 = vmatmul.bf16.gmra.mxu0 %v3078
  %v3201 = vpop.f32.mrf.mxu0
  %v3202 = vadd.f32 %v3189, %v3201
  %v3203 = vpop.f32.mrf.mxu0
  %3204 = vdwg.mxu0
  %3205 = vmatpush.bf16.msra.mxu0 %v2785
  %3206 = vmatpush.bf16.msra.mxu0 %v2778
  %3207 = vmatpush.bf16.msra.mxu0 %v2771
  %3208 = vmatpush.bf16.msra.mxu0 %v2764
  %3209 = vmatpush.bf16.msra.mxu0 %v2757
  %3210 = vmatpush.bf16.msra.mxu0 %v2750
  %3211 = vmatpush.bf16.msra.mxu0 %v2743
  %3212 = vmatpush.bf16.msra.mxu0 %v2736
  %3213 = vmatmul.bf16.gmra.mxu0 %v1979
  %v3214 = vpop.f32.mrf.mxu0
  %v3215 = vadd.f32 %v2183, %v3214
  %v3216 = vpop.f32.mrf.mxu0
  %3217 = vdwg.mxu0
  %3218 = vmatpush.bf16.msra.mxu0 %v2841
  %3219 = vmatpush.bf16.msra.mxu0 %v2834
  %3220 = vmatpush.bf16.msra.mxu0 %v2827
  %3221 = vmatpush.bf16.msra.mxu0 %v2820
  %3222 = vmatpush.bf16.msra.mxu0 %v2813
  %3223 = vmatpush.bf16.msra.mxu0 %v2806
  %3224 = vmatpush.bf16.msra.mxu0 %v2799
  %3225 = vmatpush.bf16.msra.mxu0 %v2792
  %3226 = vmatmul.bf16.gmra.mxu0 %v1980
  %v3227 = vpop.f32.mrf.mxu0
  %v3228 = vadd.f32 %v3215, %v3227
  %v3229 = vpop.f32.mrf.mxu0
  %3230 = vdwg.mxu0
  %3231 = vmatpush.bf16.msra.mxu0 %v2897
  %3232 = vmatpush.bf16.msra.mxu0 %v2890
  %3233 = vmatpush.bf16.msra.mxu0 %v2883
  %3234 = vmatpush.bf16.msra.mxu0 %v2876
  %3235 = vmatpush.bf16.msra.mxu0 %v2869
  %3236 = vmatpush.bf16.msra.mxu0 %v2862
  %3237 = vmatpush.bf16.msra.mxu0 %v2855
  %3238 = vmatpush.bf16.msra.mxu0 %v2848
  %3239 = vmatmul.bf16.gmra.mxu0 %v1981
  %v3240 = vpop.f32.mrf.mxu0
  %v3241 = vadd.f32 %v3228, %v3240
  %v3242 = vpop.f32.mrf.mxu0
  %3243 = vdwg.mxu0
  %3244 = vmatpush.bf16.msra.mxu0 0
  %3245 = vmatpush.bf16.msra.mxu0 0
  %3246 = vmatpush.bf16.msra.mxu0 0
  %3247 = vmatpush.bf16.msra.mxu0 0
  %3248 = vmatpush.bf16.msra.mxu0 0
  %3249 = vmatpush.bf16.msra.mxu0 0
  %3250 = vmatpush.bf16.msra.mxu0 0
  %3251 = vmatpush.bf16.msra.mxu0 %v3087
  %3252 = vmatmul.bf16.gmra.mxu0 %v3078
  %v3253 = vpop.f32.mrf.mxu0
  %v3254 = vadd.f32 %v3241, %v3253
  %v3255 = vpop.f32.mrf.mxu0
  %3256 = vdwg.mxu0
  %3257 = vmatpush.bf16.msra.mxu0 %v2786
  %3258 = vmatpush.bf16.msra.mxu0 %v2779
  %3259 = vmatpush.bf16.msra.mxu0 %v2772
  %3260 = vmatpush.bf16.msra.mxu0 %v2765
  %3261 = vmatpush.bf16.msra.mxu0 %v2758
  %3262 = vmatpush.bf16.msra.mxu0 %v2751
  %3263 = vmatpush.bf16.msra.mxu0 %v2744
  %3264 = vmatpush.bf16.msra.mxu0 %v2737
  %3265 = vmatmul.bf16.gmra.mxu0 %v1979
  %v3266 = vpop.f32.mrf.mxu0
  %v3267 = vadd.f32 %v2184, %v3266
  %v3268 = vpop.f32.mrf.mxu0
  %3269 = vdwg.mxu0
  %3270 = vmatpush.bf16.msra.mxu0 %v2842
  %3271 = vmatpush.bf16.msra.mxu0 %v2835
  %3272 = vmatpush.bf16.msra.mxu0 %v2828
  %3273 = vmatpush.bf16.msra.mxu0 %v2821
  %3274 = vmatpush.bf16.msra.mxu0 %v2814
  %3275 = vmatpush.bf16.msra.mxu0 %v2807
  %3276 = vmatpush.bf16.msra.mxu0 %v2800
  %3277 = vmatpush.bf16.msra.mxu0 %v2793
  %3278 = vmatmul.bf16.gmra.mxu0 %v1980
  %v3279 = vpop.f32.mrf.mxu0
  %v3280 = vadd.f32 %v3267, %v3279
  %v3281 = vpop.f32.mrf.mxu0
  %3282 = vdwg.mxu0
  %3283 = vmatpush.bf16.msra.mxu0 %v2898
  %3284 = vmatpush.bf16.msra.mxu0 %v2891
  %3285 = vmatpush.bf16.msra.mxu0 %v2884
  %3286 = vmatpush.bf16.msra.mxu0 %v2877
  %3287 = vmatpush.bf16.msra.mxu0 %v2870
  %3288 = vmatpush.bf16.msra.mxu0 %v2863
  %3289 = vmatpush.bf16.msra.mxu0 %v2856
  %3290 = vmatpush.bf16.msra.mxu0 %v2849
  %3291 = vmatmul.bf16.gmra.mxu0 %v1981
  %v3292 = vpop.f32.mrf.mxu0
  %v3293 = vadd.f32 %v3280, %v3292
  %v3294 = vpop.f32.mrf.mxu0
  %3295 = vdwg.mxu0
  %3296 = vmatpush.bf16.msra.mxu0 0
  %3297 = vmatpush.bf16.msra.mxu0 0
  %3298 = vmatpush.bf16.msra.mxu0 0
  %3299 = vmatpush.bf16.msra.mxu0 0
  %3300 = vmatpush.bf16.msra.mxu0 0
  %3301 = vmatpush.bf16.msra.mxu0 0
  %3302 = vmatpush.bf16.msra.mxu0 0
  %3303 = vmatpush.bf16.msra.mxu0 %v3090
  %3304 = vmatmul.bf16.gmra.mxu0 %v3078
  %v3305 = vpop.f32.mrf.mxu0
  %v3306 = vadd.f32 %v3293, %v3305
  %v3307 = vpop.f32.mrf.mxu0
  %3308 = vdwg.mxu0
  %3309 = vmatpush.bf16.msra.mxu0 %v2787
  %3310 = vmatpush.bf16.msra.mxu0 %v2780
  %3311 = vmatpush.bf16.msra.mxu0 %v2773
  %3312 = vmatpush.bf16.msra.mxu0 %v2766
  %3313 = vmatpush.bf16.msra.mxu0 %v2759
  %3314 = vmatpush.bf16.msra.mxu0 %v2752
  %3315 = vmatpush.bf16.msra.mxu0 %v2745
  %3316 = vmatpush.bf16.msra.mxu0 %v2738
  %3317 = vmatmul.bf16.gmra.mxu0 %v1979
  %v3318 = vpop.f32.mrf.mxu0
  %v3319 = vadd.f32 %v2185, %v3318
  %v3320 = vpop.f32.mrf.mxu0
  %3321 = vdwg.mxu0
  %3322 = vmatpush.bf16.msra.mxu0 %v2843
  %3323 = vmatpush.bf16.msra.mxu0 %v2836
  %3324 = vmatpush.bf16.msra.mxu0 %v2829
  %3325 = vmatpush.bf16.msra.mxu0 %v2822
  %3326 = vmatpush.bf16.msra.mxu0 %v2815
  %3327 = vmatpush.bf16.msra.mxu0 %v2808
  %3328 = vmatpush.bf16.msra.mxu0 %v2801
  %3329 = vmatpush.bf16.msra.mxu0 %v2794
  %3330 = vmatmul.bf16.gmra.mxu0 %v1980
  %v3331 = vpop.f32.mrf.mxu0
  %v3332 = vadd.f32 %v3319, %v3331
  %v3333 = vpop.f32.mrf.mxu0
  %3334 = vdwg.mxu0
  %3335 = vmatpush.bf16.msra.mxu0 %v2899
  %3336 = vmatpush.bf16.msra.mxu0 %v2892
  %3337 = vmatpush.bf16.msra.mxu0 %v2885
  %3338 = vmatpush.bf16.msra.mxu0 %v2878
  %3339 = vmatpush.bf16.msra.mxu0 %v2871
  %3340 = vmatpush.bf16.msra.mxu0 %v2864
  %3341 = vmatpush.bf16.msra.mxu0 %v2857
  %3342 = vmatpush.bf16.msra.mxu0 %v2850
  %3343 = vmatmul.bf16.gmra.mxu0 %v1981
  %v3344 = vpop.f32.mrf.mxu0
  %v3345 = vadd.f32 %v3332, %v3344
  %v3346 = vpop.f32.mrf.mxu0
  %3347 = vdwg.mxu0
  %3348 = vmatpush.bf16.msra.mxu0 0
  %3349 = vmatpush.bf16.msra.mxu0 0
  %3350 = vmatpush.bf16.msra.mxu0 0
  %3351 = vmatpush.bf16.msra.mxu0 0
  %3352 = vmatpush.bf16.msra.mxu0 0
  %3353 = vmatpush.bf16.msra.mxu0 0
  %3354 = vmatpush.bf16.msra.mxu0 0
  %3355 = vmatpush.bf16.msra.mxu0 %v3093
  %3356 = vmatmul.bf16.gmra.mxu0 %v3078
  %v3357 = vpop.f32.mrf.mxu0
  %v3358 = vadd.f32 %v3345, %v3357
  %v3359 = vpop.f32.mrf.mxu0
  %3360 = vdwg.mxu0
  %3361 = vmatpush.bf16.msra.mxu0 %v2788
  %3362 = vmatpush.bf16.msra.mxu0 %v2781
  %3363 = vmatpush.bf16.msra.mxu0 %v2774
  %3364 = vmatpush.bf16.msra.mxu0 %v2767
  %3365 = vmatpush.bf16.msra.mxu0 %v2760
  %3366 = vmatpush.bf16.msra.mxu0 %v2753
  %3367 = vmatpush.bf16.msra.mxu0 %v2746
  %3368 = vmatpush.bf16.msra.mxu0 %v2739
  %3369 = vmatmul.bf16.gmra.mxu0 %v1979
  %v3370 = vpop.f32.mrf.mxu0
  %v3371 = vadd.f32 %v2186, %v3370
  %v3372 = vpop.f32.mrf.mxu0
  %3373 = vdwg.mxu0
  %3374 = vmatpush.bf16.msra.mxu0 %v2844
  %3375 = vmatpush.bf16.msra.mxu0 %v2837
  %3376 = vmatpush.bf16.msra.mxu0 %v2830
  %3377 = vmatpush.bf16.msra.mxu0 %v2823
  %3378 = vmatpush.bf16.msra.mxu0 %v2816
  %3379 = vmatpush.bf16.msra.mxu0 %v2809
  %3380 = vmatpush.bf16.msra.mxu0 %v2802
  %3381 = vmatpush.bf16.msra.mxu0 %v2795
  %3382 = vmatmul.bf16.gmra.mxu0 %v1980
  %v3383 = vpop.f32.mrf.mxu0
  %v3384 = vadd.f32 %v3371, %v3383
  %v3385 = vpop.f32.mrf.mxu0
  %3386 = vdwg.mxu0
  %3387 = vmatpush.bf16.msra.mxu0 %v2900
  %3388 = vmatpush.bf16.msra.mxu0 %v2893
  %3389 = vmatpush.bf16.msra.mxu0 %v2886
  %3390 = vmatpush.bf16.msra.mxu0 %v2879
  %3391 = vmatpush.bf16.msra.mxu0 %v2872
  %3392 = vmatpush.bf16.msra.mxu0 %v2865
  %3393 = vmatpush.bf16.msra.mxu0 %v2858
  %3394 = vmatpush.bf16.msra.mxu0 %v2851
  %3395 = vmatmul.bf16.gmra.mxu0 %v1981
  %v3396 = vpop.f32.mrf.mxu0
  %v3397 = vadd.f32 %v3384, %v3396
  %v3398 = vpop.f32.mrf.mxu0
  %3399 = vdwg.mxu0
  %3400 = vmatpush.bf16.msra.mxu0 0
  %3401 = vmatpush.bf16.msra.mxu0 0
  %3402 = vmatpush.bf16.msra.mxu0 0
  %3403 = vmatpush.bf16.msra.mxu0 0
  %3404 = vmatpush.bf16.msra.mxu0 0
  %3405 = vmatpush.bf16.msra.mxu0 0
  %3406 = vmatpush.bf16.msra.mxu0 0
  %3407 = vmatpush.bf16.msra.mxu0 %v3096
  %3408 = vmatmul.bf16.gmra.mxu0 %v3078
  %v3409 = vpop.f32.mrf.mxu0
  %v3410 = vadd.f32 %v3397, %v3409
  %v3411 = vpop.f32.mrf.mxu0
  %3412 = vdwg.mxu0
  %3413 = vmatpush.bf16.msra.mxu0 %v2789
  %3414 = vmatpush.bf16.msra.mxu0 %v2782
  %3415 = vmatpush.bf16.msra.mxu0 %v2775
  %3416 = vmatpush.bf16.msra.mxu0 %v2768
  %3417 = vmatpush.bf16.msra.mxu0 %v2761
  %3418 = vmatpush.bf16.msra.mxu0 %v2754
  %3419 = vmatpush.bf16.msra.mxu0 %v2747
  %3420 = vmatpush.bf16.msra.mxu0 %v2740
  %3421 = vmatmul.bf16.gmra.mxu0 %v1979
  %v3422 = vpop.f32.mrf.mxu0
  %v3423 = vadd.f32 %v2187, %v3422
  %v3424 = vpop.f32.mrf.mxu0
  %3425 = vdwg.mxu0
  %3426 = vmatpush.bf16.msra.mxu0 %v2845
  %3427 = vmatpush.bf16.msra.mxu0 %v2838
  %3428 = vmatpush.bf16.msra.mxu0 %v2831
  %3429 = vmatpush.bf16.msra.mxu0 %v2824
  %3430 = vmatpush.bf16.msra.mxu0 %v2817
  %3431 = vmatpush.bf16.msra.mxu0 %v2810
  %3432 = vmatpush.bf16.msra.mxu0 %v2803
  %3433 = vmatpush.bf16.msra.mxu0 %v2796
  %3434 = vmatmul.bf16.gmra.mxu0 %v1980
  %v3435 = vpop.f32.mrf.mxu0
  %v3436 = vadd.f32 %v3423, %v3435
  %v3437 = vpop.f32.mrf.mxu0
  %3438 = vdwg.mxu0
  %3439 = vmatpush.bf16.msra.mxu0 %v2901
  %3440 = vmatpush.bf16.msra.mxu0 %v2894
  %3441 = vmatpush.bf16.msra.mxu0 %v2887
  %3442 = vmatpush.bf16.msra.mxu0 %v2880
  %3443 = vmatpush.bf16.msra.mxu0 %v2873
  %3444 = vmatpush.bf16.msra.mxu0 %v2866
  %3445 = vmatpush.bf16.msra.mxu0 %v2859
  %3446 = vmatpush.bf16.msra.mxu0 %v2852
  %3447 = vmatmul.bf16.gmra.mxu0 %v1981
  %v3448 = vpop.f32.mrf.mxu0
  %v3449 = vadd.f32 %v3436, %v3448
  %v3450 = vpop.f32.mrf.mxu0
  %3451 = vdwg.mxu0
  %3452 = vmatpush.bf16.msra.mxu0 0
  %3453 = vmatpush.bf16.msra.mxu0 0
  %3454 = vmatpush.bf16.msra.mxu0 0
  %3455 = vmatpush.bf16.msra.mxu0 0
  %3456 = vmatpush.bf16.msra.mxu0 0
  %3457 = vmatpush.bf16.msra.mxu0 0
  %3458 = vmatpush.bf16.msra.mxu0 0
  %3459 = vmatpush.bf16.msra.mxu0 %v3099
  %3460 = vmatmul.bf16.gmra.mxu0 %v3078
  %v3461 = vpop.f32.mrf.mxu0
  %v3462 = vadd.f32 %v3449, %v3461
  %v3463 = vpop.f32.mrf.mxu0
  %3464 = vdwg.mxu0
  %v3465 = vmul.f32 %v3150, 0.5
  %v3466 = vmul.f32 %v3202, 0.5
  %v3467 = vmul.f32 %v3254, 0.5
  %v3468 = vmul.f32 %v3306, 0.5
  %v3469 = vmul.f32 %v3358, 0.5
  %v3470 = vmul.f32 %v3410, 0.5
  %v3471 = vmul.f32 %v3462, 0.5
  %v3472 = vtanh.pop %v3465
  %v3473 = vtanh.pop %v3466
  %v3474 = vtanh.pop %v3467
  %v3475 = vtanh.pop %v3468
  %v3476 = vtanh.pop %v3469
  %v3477 = vtanh.pop %v3470
  %v3478 = vtanh.pop %v3471
  %v3479 = vmul.f32 %v3472, 0.5
  %v3480 = vmul.f32 %v3473, 0.5
  %v3481 = vmul.f32 %v3474, 0.5
  %v3482 = vmul.f32 %v3475, 0.5
  %v3483 = vmul.f32 %v3476, 0.5
  %v3484 = vmul.f32 %v3477, 0.5
  %v3485 = vmul.f32 %v3478, 0.5
  %v3486 = vadd.f32 %v3479, 0.5
  %v3487 = vadd.f32 %v3480, 0.5
  %v3488 = vadd.f32 %v3481, 0.5
  %v3489 = vadd.f32 %v3482, 0.5
  %v3490 = vadd.f32 %v3483, 0.5
  %v3491 = vadd.f32 %v3484, 0.5
  %v3492 = vadd.f32 %v3485, 0.5
  %v3493 = vpack.c.bf16 %v3487, %v3486
  %v3494 = vpack.c.bf16 %v3489, %v3488
  %v3495 = vpack.c.bf16 %v3491, %v3490
  %v3496 = vpack.c.bf16 %v3492, %v3492
  %3497 = vst [vmem:[%s10] sm:$0xff] %v3493
  %3498 = vst [vmem:[%s10 + $0x8] sm:$0xff] %v3494
  %3499 = vst [vmem:[%s10 + $0x10] sm:$0xff] %v3495
  %3500 = vst [vmem:[%s10 + $0x18] sm:$0xf] %v3496
  // Predicated region
  $region42: #{vae_forward.1} parent=0 // pred_check
    _
  $region43: #{vae_forward.1} parent=0 // pred_check_branch
    %3502 = sbr.rel (0) target = $region45
  $region44: #{vae_forward.1} parent=0 // pred_region
    _
  $region45: #{vae_forward.1} parent=0 // pred_fallthru
    _
  // Predicated region
  $region46: #{vae_forward.1} parent=0 // pred_check
    _
  $region47: #{vae_forward.1} parent=0 // pred_check_branch
    %3504 = sbr.rel (0) target = $region49
  $region48: #{vae_forward.1} parent=0 // pred_region
    _
  $region49: #{vae_forward.1} parent=0 // pred_fallthru
    _
  // Predicated region
  $region50: #{vae_forward.1} parent=0 // pred_check
    _
  $region51: #{vae_forward.1} parent=0 // pred_check_branch
    %3506 = sbr.rel (0) target = $region53
  $region52: #{vae_forward.1} parent=0 // pred_region
    _
  $region53: #{vae_forward.1} parent=0 // pred_fallthru
    _
  // Predicated region
  $region54: #{vae_forward.1} parent=0 // pred_check
    _
  $region55: #{vae_forward.1} parent=0 // pred_check_branch
    %3508 = sbr.rel (0) target = $region57
  $region56: #{vae_forward.1} parent=0 // pred_region
    _
  $region57: #{vae_forward.1} parent=0 // pred_fallthru
    _

</llo_original>
